<compile_context>
chip_gen: v6e
topology: v6e:2x2x1
jax: 0.10.0
libtpu: 0.0.40
codegen_flags: <defaults>
</compile_context>

<pallas_src>
import jax
import jax.numpy as jnp
from jax.experimental import pallas as pl
from jax.experimental.pallas import tpu as pltpu


def deep_conv1d_kernel(x_ref, w1_ref, b1_ref, w2_ref, b2_ref, o_ref):
    # x_ref: (tm, nx) row tile; w1_ref: (nx, nf); w2_ref: (nf, nf); b*_ref: (1, nf) f32.
    # Layer 1: f32 accumulation on the MXU, f32 bias add.
    h1 = jnp.dot(x_ref[...], w1_ref[...], preferred_element_type=jnp.float32) + b1_ref[...]
    # Layer 2 on relu(h1); cast activations to the weight dtype so the MXU runs at the
    # input precision (bf16 inputs -> bf16 MXU passes), accumulate in f32.
    h2 = jnp.dot(jnp.maximum(h1, 0.0).astype(w2_ref.dtype), w2_ref[...],
                 preferred_element_type=jnp.float32) + b2_ref[...]
    # Residual uses the PRE-relu h1; single lane-dense store of the fused result.
    o_ref[...] = (h2 + h1).astype(o_ref.dtype)


def _pick_row_tile(M, tm_max):
    """Largest multiple-of-8 divisor of M that is <= tm_max (None if none exists)."""
    best = None
    t = 8
    while t <= min(tm_max, M):
        if M % t == 0:
            best = t
        t += 8
    return best


def deep_conv1d(x, w1, b1, w2, b2, *, tm=512):
    """Fused y = relu(x@w1 + b1) @ w2 + b2 + (x@w1 + b1) over the last dim of x."""
    *lead, nx = x.shape
    nf = w1.shape[1]
    x2 = x.reshape(-1, nx)
    M = x2.shape[0]

    # Pick a row tile that divides M (avoids an extra pad + slice HBM pass).
    if M <= tm:
        tm_eff, Mp = M, M                     # single full-extent block (allowed even if M%8!=0)
    else:
        t = _pick_row_tile(M, tm)
        if t is not None and t >= 128:
            tm_eff, Mp = t, M                 # common path: divisor tile, no padding
        else:
            # Awkward M (e.g. only tiny divisors): one-time pad beats many 8-row tiles.
            # TODO(synk): handle the ragged last tile with a masked store instead of padding.
            tm_eff = tm
            Mp = pl.cdiv(M, tm_eff) * tm_eff
            x2 = jnp.pad(x2, ((0, Mp - M), (0, 0)))

    in_itemsize = int(jnp.dtype(x2.dtype).itemsize)
    w_itemsize = int(jnp.dtype(w1.dtype).itemsize)

    flops = 2 * M * nx * nf + 2 * M * nf * nf
    bytes_accessed = int(
        in_itemsize * (M * nx + M * nf) + w_itemsize * (nx * nf + nf * nf) + 4 * 2 * nf
    )

    # Raise the scoped-VMEM budget only if the resident weights need it (double-buffered
    # blocks per spec); cap well below physical VMEM (v7x has 64 MiB total).
    vmem_need = 2 * (tm_eff * nx * in_itemsize
                     + nx * nf * w_itemsize + nf * 4
                     + nf * nf * w_itemsize + nf * 4
                     + tm_eff * nf * in_itemsize)
    cp_kwargs = dict(dimension_semantics=("parallel",))   # rows independent -> megacore
    if vmem_need > 24 * 1024 * 1024:
        cp_kwargs["vmem_limit_bytes"] = min(int(vmem_need * 5 // 4), 56 * 1024 * 1024)

    out = pl.pallas_call(
        deep_conv1d_kernel,
        out_shape=jax.ShapeDtypeStruct((Mp, nf), x.dtype),
        grid_spec=pltpu.PrefetchScalarGridSpec(
            num_scalar_prefetch=0,
            grid=(Mp // tm_eff,),
            in_specs=[
                pl.BlockSpec((tm_eff, nx), lambda i: (i, 0)),   # row tile of x (streamed)
                pl.BlockSpec((nx, nf), lambda i: (0, 0)),       # w1, resident
                pl.BlockSpec((1, nf), lambda i: (0, 0)),        # b1 (f32), resident
                pl.BlockSpec((nf, nf), lambda i: (0, 0)),       # w2, resident
                pl.BlockSpec((1, nf), lambda i: (0, 0)),        # b2 (f32), resident
            ],
            out_specs=pl.BlockSpec((tm_eff, nf), lambda i: (i, 0)),
        ),
        compiler_params=pltpu.CompilerParams(**cp_kwargs),
        cost_estimate=pl.CostEstimate(
            flops=int(flops), transcendentals=0, bytes_accessed=bytes_accessed
        ),
    )(
        x2,
        w1,
        b1.reshape(1, nf).astype(jnp.float32),
        w2,
        b2.reshape(1, nf).astype(jnp.float32),
    )

    if Mp != M:
        out = out[:M]
    return out.reshape(*lead, nf)


if __name__ == "__main__":
    # Module config: rf=1, nx=128, nf=128 (nf multiple of 128 -> lane-dense output stores).
    nx, nf = 128, 128

    key = jax.random.PRNGKey(0)
    kx, kx2, kx3, k1, k2 = jax.random.split(key, 5)

    # Deterministic parameter init matching __init__: w ~ N(0, 0.02), b = 0.
    w1 = (0.02 * jax.random.normal(k1, (nx, nf))).astype(jnp.float32)
    b1 = jnp.zeros((nf,), jnp.float32)
    w2 = (0.02 * jax.random.normal(k2, (nf, nf))).astype(jnp.float32)
    b2 = jnp.zeros((nf,), jnp.float32)

    def ref_fn(xin):
        x2 = xin.reshape(-1, nx).astype(jnp.float32)
        h1 = x2 @ w1 + b1
        y = jnp.maximum(h1, 0.0) @ w2 + b2 + h1
        return y.reshape(*xin.shape[:-1], nf)

    # Case 1: 3-D input (exercises the view(-1, nx) semantics), M = 4*256 = 1024 rows
    # -> tm=512 divides M, grid of 2 steps, no padding.
    x = jax.random.normal(kx, (4, 256, nx), dtype=jnp.float32)
    y = jax.block_until_ready(deep_conv1d(x, w1, b1, w2, b2, tm=512))
    assert y.shape == (4, 256, nf)
    # Tolerance accounts for TPU default matmul precision (bf16 MXU passes) possibly
    # differing between the kernel and the XLA reference.
    assert jnp.allclose(y, ref_fn(x), atol=1e-2, rtol=1e-2), "f32 kernel mismatch (3-D)"

    # Case 2: small row count (M=18 <= tm -> single full-extent block, no (8,128) padding).
    xs = jax.random.normal(kx2, (2, 9, nx), dtype=jnp.float32)
    ys = jax.block_until_ready(deep_conv1d(xs, w1, b1, w2, b2, tm=512))
    assert jnp.allclose(ys, ref_fn(xs), atol=1e-2, rtol=1e-2), "f32 kernel mismatch (small)"

    # Case 3: awkward M (520 rows -> no divisor >= 128) exercises the pad fallback path.
    xr = jax.random.normal(kx3, (520, nx), dtype=jnp.float32)
    yr = jax.block_until_ready(deep_conv1d(xr, w1, b1, w2, b2, tm=512))
    assert yr.shape == (520, nf)
    assert jnp.allclose(yr, ref_fn(xr), atol=1e-2, rtol=1e-2), "f32 kernel mismatch (ragged)"

    # Case 4: bf16 inputs/weights (v6e/v7x bandwidth win); f32 accumulation/biases in-kernel.
    yb = jax.block_until_ready(
        deep_conv1d(x.astype(jnp.bfloat16),
                    w1.astype(jnp.bfloat16), b1,
                    w2.astype(jnp.bfloat16), b2, tm=512))
    assert jnp.allclose(yb.astype(jnp.float32), ref_fn(x), atol=5e-2, rtol=5e-2), \
        "bf16 kernel mismatch"

    print("KERNEL_OK")
</pallas_src>

<mosaic_0001>
module attributes {stable_mosaic.version = 11 : i64} {
  func.func @deep_conv1d_kernel(%arg0: i32, %arg1: memref<512x128xf32, #tpu.memory_space<vmem>>, %arg2: memref<128x128xf32, #tpu.memory_space<vmem>>, %arg3: memref<1x128xf32, #tpu.memory_space<vmem>>, %arg4: memref<128x128xf32, #tpu.memory_space<vmem>>, %arg5: memref<1x128xf32, #tpu.memory_space<vmem>>, %arg6: memref<512x128xf32, #tpu.memory_space<vmem>>) attributes {dimension_semantics = [#tpu.dimension_semantics<parallel>], iteration_bounds = array<i64: 2>, scalar_prefetch = 0 : i64, scratch_operands = 0 : i64, tpu.core_type = #tpu.core_type<tc>, window_params = [{transform_indices = @transform_0, window_bounds = array<i64: 512, 128>}, {pipeline_mode = #tpu.pipeline_mode<synchronous>, transform_indices = @transform_1, window_bounds = array<i64: 128, 128>}, {pipeline_mode = #tpu.pipeline_mode<synchronous>, transform_indices = @transform_2, window_bounds = array<i64: 1, 128>}, {pipeline_mode = #tpu.pipeline_mode<synchronous>, transform_indices = @transform_3, window_bounds = array<i64: 128, 128>}, {pipeline_mode = #tpu.pipeline_mode<synchronous>, transform_indices = @transform_4, window_bounds = array<i64: 1, 128>}, {transform_indices = @transform_5, window_bounds = array<i64: 512, 128>}]} {
    %c0 = arith.constant 0 : index
    %c0_0 = arith.constant 0 : index
    %0 = vector.load %arg1[%c0, %c0_0] : memref<512x128xf32, #tpu.memory_space<vmem>>, vector<512x128xf32>
    %c0_1 = arith.constant 0 : index
    %c0_2 = arith.constant 0 : index
    %1 = vector.load %arg2[%c0_1, %c0_2] : memref<128x128xf32, #tpu.memory_space<vmem>>, vector<128x128xf32>
    %cst = arith.constant dense<0.000000e+00> : vector<512x128xf32>
    %2 = tpu.matmul %0, %1, %cst {dimension_numbers = #tpu.dot_dimension_numbers<[1], [0], [0], [1], [0, 0, 1, 1], [], []>} : vector<512x128xf32>, vector<128x128xf32>, vector<512x128xf32> -> vector<512x128xf32>
    %c0_3 = arith.constant 0 : index
    %c0_4 = arith.constant 0 : index
    %3 = vector.load %arg3[%c0_3, %c0_4] : memref<1x128xf32, #tpu.memory_space<vmem>>, vector<1x128xf32>
    %4 = vector.broadcast %3 : vector<1x128xf32> to vector<512x128xf32>
    %5 = arith.addf %2, %4 : vector<512x128xf32>
    %cst_5 = arith.constant 0.000000e+00 : f32
    %6 = vector.broadcast %cst_5 : f32 to vector<512x128xf32>
    %7 = arith.maximumf %5, %6 : vector<512x128xf32>
    %c0_6 = arith.constant 0 : index
    %c0_7 = arith.constant 0 : index
    %8 = vector.load %arg4[%c0_6, %c0_7] : memref<128x128xf32, #tpu.memory_space<vmem>>, vector<128x128xf32>
    %cst_8 = arith.constant dense<0.000000e+00> : vector<512x128xf32>
    %9 = tpu.matmul %7, %8, %cst_8 {dimension_numbers = #tpu.dot_dimension_numbers<[1], [0], [0], [1], [0, 0, 1, 1], [], []>} : vector<512x128xf32>, vector<128x128xf32>, vector<512x128xf32> -> vector<512x128xf32>
    %c0_9 = arith.constant 0 : index
    %c0_10 = arith.constant 0 : index
    %10 = vector.load %arg5[%c0_9, %c0_10] : memref<1x128xf32, #tpu.memory_space<vmem>>, vector<1x128xf32>
    %11 = vector.broadcast %10 : vector<1x128xf32> to vector<512x128xf32>
    %12 = arith.addf %9, %11 : vector<512x128xf32>
    %13 = arith.addf %12, %5 : vector<512x128xf32>
    %c0_11 = arith.constant 0 : index
    %c0_12 = arith.constant 0 : index
    %14 = vector.load %arg6[%c0_11, %c0_12] : memref<512x128xf32, #tpu.memory_space<vmem>>, vector<512x128xf32>
    tpu.vector_store %arg6[%c0_11, %c0_12], %13 {strides = array<i32>} : memref<512x128xf32, #tpu.memory_space<vmem>>, vector<512x128xf32>,
    return
  }
  func.func @transform_0(%arg0: i32) -> (i32, i32) {
    %c0_i32 = arith.constant 0 : i32
    %c0_i32_0 = arith.constant 0 : i32
    return %arg0, %c0_i32 : i32, i32
  }
  func.func @transform_1(%arg0: i32) -> (i32, i32) {
    %c0_i32 = arith.constant 0 : i32
    %c0_i32_0 = arith.constant 0 : i32
    %c0_i32_1 = arith.constant 0 : i32
    return %c0_i32, %c0_i32_0 : i32, i32
  }
  func.func @transform_2(%arg0: i32) -> (i32, i32) {
    %c0_i32 = arith.constant 0 : i32
    %c0_i32_0 = arith.constant 0 : i32
    %c0_i32_1 = arith.constant 0 : i32
    return %c0_i32, %c0_i32_0 : i32, i32
  }
  func.func @transform_3(%arg0: i32) -> (i32, i32) {
    %c0_i32 = arith.constant 0 : i32
    %c0_i32_0 = arith.constant 0 : i32
    %c0_i32_1 = arith.constant 0 : i32
    return %c0_i32, %c0_i32_0 : i32, i32
  }
  func.func @transform_4(%arg0: i32) -> (i32, i32) {
    %c0_i32 = arith.constant 0 : i32
    %c0_i32_0 = arith.constant 0 : i32
    %c0_i32_1 = arith.constant 0 : i32
    return %c0_i32, %c0_i32_0 : i32, i32
  }
  func.func @transform_5(%arg0: i32) -> (i32, i32) {
    %c0_i32 = arith.constant 0 : i32
    %c0_i32_0 = arith.constant 0 : i32
    return %arg0, %c0_i32 : i32, i32
  }
}

</mosaic_0001>

<llo_original>
// kernel: tpu_custom_call.1
$region0: #{tpu_custom_call.1}
  #allocation0 [shape = 'u32[]', space=smem, size = 0x4, offset = 0x4, fixed_abs, tag = 'smem constant byte address 0x4 - core index']
  #allocation1 [shape = 'u32[144,128]{1,0:T(1,128)}', space=vmem, size = 0x12000, scoped, tag = 'internal scratch']
  %s0 = inlined_call_operand.hbm [shape: f32[1024,128], index: 0, kind: input, shape index: {}]
  %s1 = inlined_call_operand.hbm [shape: f32[128,128], index: 1, kind: input, shape index: {}]
  %s2 = inlined_call_operand.vmem [shape: f32[1,128], index: 2, kind: input, shape index: {}]
  %s3 = inlined_call_operand.hbm [shape: f32[128,128], index: 3, kind: input, shape index: {}]
  %s4 = inlined_call_operand.vmem [shape: f32[1,128], index: 4, kind: input, shape index: {}]
  %s5 = inlined_call_operand.hbm [shape: f32[1024,128], index: 5, kind: output, shape index: {}]
  %s6 = sld [smem:[#allocation0]]
  $region65: #{tpu_custom_call.1} parent=0
    _
  %s8 = ssub.s32 1, %s6
  %s9 = scalar_select 0, %s8, %s6
  $region1: #{tpu_custom_call.1} parent=0
    #allocation2 [shape = 'u8[524288]{0}', space=vmem, size = 0x80000, scoped, tag = 'input window, operand 0']
    #allocation3 [shape = 's32[2]{0}', space=sflag, size = 0x8, scoped, tag = 'scoped memory for tpu_custom_call.1']
    #allocation4 [shape = 's32[2]{0}', space=sflag, size = 0x8, scoped, tag = 'scoped memory for tpu_custom_call.1']
    #allocation5 [shape = 'u8[65536]{0}', space=vmem, size = 0x10000, scoped, tag = 'input window, operand 1, single buffered']
    #allocation6 [shape = 's32[1]{0}', space=sflag, size = 0x4, scoped, tag = 'scoped memory for tpu_custom_call.1']
    #allocation7 [shape = 'u8[65536]{0}', space=vmem, size = 0x10000, scoped, tag = 'input window, operand 3, single buffered']
    #allocation8 [shape = 'u8[524288]{0}', space=vmem, size = 0x80000, scoped, tag = 'output window, operand 0']
    %10 = vsyncpa [#allocation3], 0
    %s11 = scalar_lea.sflag [#allocation3], 1
    %12 = vsyncpa %s11, 0
    %13 = vsyncpa [#allocation6], 0
    %14 = vsyncpa [#allocation4], 0
    %s15 = scalar_lea.sflag [#allocation4], 1
    %16 = vsyncpa %s15, 0
    loop: start=0, step=1, limit=4
    $region2: #{tpu_custom_call.1} parent=1 // loop_pre_header
      _
    $region3: #{tpu_custom_call.1} parent=1 // loop_header
      %s18 = sphi 0, %s22
      %p19 = scmp.ge.s32.totalorder %s18, 4
      %s28 = sphi 0, %s30
      %s31 = sphi 0, %s28
      %s32 = sphi 0, %s31
      %s48 = sphi 0, %s32
      %s52 = sphi 0, %s52
      %s54 = sphi 0, %s52
      %s55 = sphi 0, %s54
      %s69 = sphi 0, %s55
      %s73 = sphi 0, %s73
      %s75 = sphi 0, %s73
      %s76 = sphi 0, %s75
      %s90 = sphi 0, %s76
      %s94 = sphi 0, %s94
      %s96 = sphi 0, %s94
      %s97 = sphi 0, %s96
      %s111 = sphi 0, %s97
      %s115 = sphi 0, %s115
      %s117 = sphi 0, %s115
      %s118 = sphi 0, %s117
      %s132 = sphi 0, %s118
      %s138 = sphi 0, %s140
      %s141 = sphi 0, %s138
      %s142 = sphi 0, %s141
      %s158 = sphi 0, %s142
    $region4: #{tpu_custom_call.1} parent=1 // loop_header_branch
      %21 = sbr.rel (%p19) target = $region8
    $region5: #{tpu_custom_call.1} parent=1 // loop_body
      %s23 = ssub.s32 %s18, 1
      %s24 = ssub.s32 %s18, 2
      %s25 = sadd.s32 %s18, 1
      %s26 = ssub.s32 %s18, %s25
      %p27 = scmp.eq.s32.totalorder %s26, 0
      %s29 = sadd.s32 %s28, 1
      %s30 = scalar_select %p27, %s28, %s29
      %p33 = pneg %p27
      %p34 = scmp.eq.s32.totalorder %s18, 1
      %p35 = por %p33, %p34
      %p36 = scmp.ne.s32.totalorder %s28, %s31
      %p37 = scmp.eq.s32.totalorder %s18, 0
      %p38 = por %p36, %p37
      %p39 = scmp.ne.s32.totalorder %s28, %s31
      %p40 = scmp.eq.s32.totalorder %s23, 1
      %p41 = por %p39, %p40
      %p42 = scmp.ne.s32.totalorder %s31, %s32
      %p43 = scmp.eq.s32.totalorder %s23, 0
      %p44 = por %p42, %p43
      %p45 = scmp.ne.s32.totalorder %s31, %s32
      %p46 = scmp.eq.s32.totalorder %s24, 1
      %p47 = por %p45, %p46
      %p49 = scmp.ne.s32.totalorder %s32, %s48
      %p50 = scmp.eq.s32.totalorder %s24, 0
      %p51 = por %p49, %p50
      %s53 = sadd.s32 %s52, 1
      %p56 = scmp.eq.s32.totalorder %s18, 1
      %p57 = scmp.ne.s32.totalorder %s52, %s54
      %p58 = scmp.eq.s32.totalorder %s18, 0
      %p59 = por %p57, %p58
      %p60 = scmp.ne.s32.totalorder %s52, %s54
      %p61 = scmp.eq.s32.totalorder %s23, 1
      %p62 = por %p60, %p61
      %p63 = scmp.ne.s32.totalorder %s54, %s55
      %p64 = scmp.eq.s32.totalorder %s23, 0
      %p65 = por %p63, %p64
      %p66 = scmp.ne.s32.totalorder %s54, %s55
      %p67 = scmp.eq.s32.totalorder %s24, 1
      %p68 = por %p66, %p67
      %p70 = scmp.ne.s32.totalorder %s55, %s69
      %p71 = scmp.eq.s32.totalorder %s24, 0
      %p72 = por %p70, %p71
      %s74 = sadd.s32 %s73, 1
      %p77 = scmp.eq.s32.totalorder %s18, 1
      %p78 = scmp.ne.s32.totalorder %s73, %s75
      %p79 = scmp.eq.s32.totalorder %s18, 0
      %p80 = por %p78, %p79
      %p81 = scmp.ne.s32.totalorder %s73, %s75
      %p82 = scmp.eq.s32.totalorder %s23, 1
      %p83 = por %p81, %p82
      %p84 = scmp.ne.s32.totalorder %s75, %s76
      %p85 = scmp.eq.s32.totalorder %s23, 0
      %p86 = por %p84, %p85
      %p87 = scmp.ne.s32.totalorder %s75, %s76
      %p88 = scmp.eq.s32.totalorder %s24, 1
      %p89 = por %p87, %p88
      %p91 = scmp.ne.s32.totalorder %s76, %s90
      %p92 = scmp.eq.s32.totalorder %s24, 0
      %p93 = por %p91, %p92
      %s95 = sadd.s32 %s94, 1
      %p98 = scmp.eq.s32.totalorder %s18, 1
      %p99 = scmp.ne.s32.totalorder %s94, %s96
      %p100 = scmp.eq.s32.totalorder %s18, 0
      %p101 = por %p99, %p100
      %p102 = scmp.ne.s32.totalorder %s94, %s96
      %p103 = scmp.eq.s32.totalorder %s23, 1
      %p104 = por %p102, %p103
      %p105 = scmp.ne.s32.totalorder %s96, %s97
      %p106 = scmp.eq.s32.totalorder %s23, 0
      %p107 = por %p105, %p106
      %p108 = scmp.ne.s32.totalorder %s96, %s97
      %p109 = scmp.eq.s32.totalorder %s24, 1
      %p110 = por %p108, %p109
      %p112 = scmp.ne.s32.totalorder %s97, %s111
      %p113 = scmp.eq.s32.totalorder %s24, 0
      %p114 = por %p112, %p113
      %s116 = sadd.s32 %s115, 1
      %p119 = scmp.eq.s32.totalorder %s18, 1
      %p120 = scmp.ne.s32.totalorder %s115, %s117
      %p121 = scmp.eq.s32.totalorder %s18, 0
      %p122 = por %p120, %p121
      %p123 = scmp.ne.s32.totalorder %s115, %s117
      %p124 = scmp.eq.s32.totalorder %s23, 1
      %p125 = por %p123, %p124
      %p126 = scmp.ne.s32.totalorder %s117, %s118
      %p127 = scmp.eq.s32.totalorder %s23, 0
      %p128 = por %p126, %p127
      %p129 = scmp.ne.s32.totalorder %s117, %s118
      %p130 = scmp.eq.s32.totalorder %s24, 1
      %p131 = por %p129, %p130
      %p133 = scmp.ne.s32.totalorder %s118, %s132
      %p134 = scmp.eq.s32.totalorder %s24, 0
      %p135 = por %p133, %p134
      %s136 = ssub.s32 %s18, %s25
      %p137 = scmp.eq.s32.totalorder %s136, 0
      %s139 = sadd.s32 %s138, 1
      %s140 = scalar_select %p137, %s138, %s139
      %p143 = pneg %p137
      %p144 = scmp.eq.s32.totalorder %s18, 1
      %p145 = por %p143, %p144
      %p146 = scmp.ne.s32.totalorder %s138, %s141
      %p147 = scmp.eq.s32.totalorder %s18, 0
      %p148 = por %p146, %p147
      %p149 = scmp.ne.s32.totalorder %s138, %s141
      %p150 = scmp.eq.s32.totalorder %s23, 1
      %p151 = por %p149, %p150
      %p152 = scmp.ne.s32.totalorder %s141, %s142
      %p153 = scmp.eq.s32.totalorder %s23, 0
      %p154 = por %p152, %p153
      %p155 = scmp.ne.s32.totalorder %s141, %s142
      %p156 = scmp.eq.s32.totalorder %s24, 1
      %p157 = por %p155, %p156
      %p159 = scmp.ne.s32.totalorder %s142, %s158
      %p160 = scmp.eq.s32.totalorder %s24, 0
      %p161 = por %p159, %p160
      %p162 = scmp.le.s32.totalorder 1, %s18
      %p163 = scmp.lt.s32.totalorder %s18, 3
      %p164 = pnand %p162, %p163
      %p165 = pneg %p164
      // Predicated region
      $region9: #{tpu_custom_call.1} parent=5 // pred_check
        _
      $region10: #{tpu_custom_call.1} parent=5 // pred_check_branch
        %167 = sbr.rel (%p164) target = $region12
      $region11: #{tpu_custom_call.1} parent=5 // pred_region
        %s168 = ssub.s32 %s18, 1
        // Predicated region
        $region13: #{tpu_custom_call.1} parent=11 // pred_check
          %p169 = pneg %p65
        $region14: #{tpu_custom_call.1} parent=11 // pred_check_branch
          %171 = sbr.rel (%p169) target = $region16
        $region15: #{tpu_custom_call.1} parent=11 // pred_region
          %s173 = ssub.s32 2048, 2048
          %174 = vsyncadd [#allocation6], %s173
          %s175 = sshll.u32 [#allocation5], 4
          %s176 = int_to_ptr.vmem [resolvable:$true] %s175
          %181 = dma.hbm_to_vmem [thread:$0]  %s1, 2048, %s176, [#allocation6], 128, 128, 8
        $region16: #{tpu_custom_call.1} parent=11 // pred_fallthru
          _
        // Predicated region
        $region17: #{tpu_custom_call.1} parent=11 // pred_check
          %p182 = pneg %p86
        $region18: #{tpu_custom_call.1} parent=11 // pred_check_branch
          %184 = sbr.rel (%p182) target = $region20
        $region19: #{tpu_custom_call.1} parent=11 // pred_region
          _
        $region20: #{tpu_custom_call.1} parent=11 // pred_fallthru
          _
        // Predicated region
        $region21: #{tpu_custom_call.1} parent=11 // pred_check
          %p185 = pneg %p107
        $region22: #{tpu_custom_call.1} parent=11 // pred_check_branch
          %187 = sbr.rel (%p185) target = $region24
        $region23: #{tpu_custom_call.1} parent=11 // pred_region
          %s189 = ssub.s32 2048, 2048
          %190 = vsyncadd [#allocation6], %s189
          %s191 = sshll.u32 [#allocation7], 4
          %s192 = int_to_ptr.vmem [resolvable:$true] %s191
          %197 = dma.hbm_to_vmem [thread:$0]  %s3, 2048, %s192, [#allocation6], 128, 128, 8
        $region24: #{tpu_custom_call.1} parent=11 // pred_fallthru
          _
        // Predicated region
        $region25: #{tpu_custom_call.1} parent=11 // pred_check
          %p198 = pneg %p128
        $region26: #{tpu_custom_call.1} parent=11 // pred_check_branch
          %200 = sbr.rel (%p198) target = $region28
        $region27: #{tpu_custom_call.1} parent=11 // pred_region
          _
        $region28: #{tpu_custom_call.1} parent=11 // pred_fallthru
          _
      $region12: #{tpu_custom_call.1} parent=5 // pred_fallthru
        _
      %p201 = scmp.lt.s32.totalorder %s18, 2
      // Predicated region
      $region29: #{tpu_custom_call.1} parent=5 // pred_check
        %p202 = pneg %p201
      $region30: #{tpu_custom_call.1} parent=5 // pred_check_branch
        %204 = sbr.rel (%p202) target = $region32
      $region31: #{tpu_custom_call.1} parent=5 // pred_region
        // Predicated region
        $region33: #{tpu_custom_call.1} parent=31 // pred_check
          %p205 = pneg %p38
        $region34: #{tpu_custom_call.1} parent=31 // pred_check_branch
          %207 = sbr.rel (%p205) target = $region36
        $region35: #{tpu_custom_call.1} parent=31 // pred_region
          %s208 = sand.u32 %s28, 1
          %s209 = scalar_lea.sflag [#allocation3], %s208
          %s210 = sand.u32 %s28, 1
          %s211 = smul.addr %s210, 512
          %s212 = scalar_lea.vmem [#allocation2], %s211
          %s213 = smul.u32 64, %s18
          %s215 = ssub.s32 8192, 8192
          %216 = vsyncadd %s209, %s215
          %s217 = smul.addr %s213, 128
          %s218 = scalar_lea.hbm %s0, %s217
          %s219 = sshll.u32 %s212, 4
          %s220 = int_to_ptr.vmem [resolvable:$true] %s219
          %225 = dma.hbm_to_vmem [thread:$0]  %s218, 8192, %s220, %s209, 128, 128, 8
        $region36: #{tpu_custom_call.1} parent=31 // pred_fallthru
          _
      $region32: #{tpu_custom_call.1} parent=5 // pred_fallthru
        _
      %p226 = scmp.le.s32.totalorder 1, %s18
      %p227 = scmp.lt.s32.totalorder %s18, 3
      %p228 = pnand %p226, %p227
      %p229 = pneg %p228
      // Predicated region
      $region37: #{tpu_custom_call.1} parent=5 // pred_check
        _
      $region38: #{tpu_custom_call.1} parent=5 // pred_check_branch
        %231 = sbr.rel (%p228) target = $region40
      $region39: #{tpu_custom_call.1} parent=5 // pred_region
        %s232 = ssub.s32 %s18, 1
        %s233 = sand.u32 %s31, 1
        %s234 = scalar_lea.sflag [#allocation3], %s233
        %s235 = sand.u32 %s31, 1
        %s236 = smul.addr %s235, 512
        %s237 = scalar_lea.vmem [#allocation2], %s236
        // Predicated region
        $region41: #{tpu_custom_call.1} parent=39 // pred_check
          %p238 = pneg %p44
        $region42: #{tpu_custom_call.1} parent=39 // pred_check_branch
          %240 = sbr.rel (%p238) target = $region44
        $region43: #{tpu_custom_call.1} parent=39 // pred_region
          %241 = dma.done %s234, 8192
        $region44: #{tpu_custom_call.1} parent=39 // pred_fallthru
          _
        // Predicated region
        $region45: #{tpu_custom_call.1} parent=39 // pred_check
          %p242 = pneg %p65
        $region46: #{tpu_custom_call.1} parent=39 // pred_check_branch
          %244 = sbr.rel (%p242) target = $region48
        $region47: #{tpu_custom_call.1} parent=39 // pred_region
          %245 = dma.done [#allocation6], 2048
        $region48: #{tpu_custom_call.1} parent=39 // pred_fallthru
          _
        // Predicated region
        $region49: #{tpu_custom_call.1} parent=39 // pred_check
          %p246 = pneg %p107
        $region50: #{tpu_custom_call.1} parent=39 // pred_check_branch
          %248 = sbr.rel (%p246) target = $region52
        $region51: #{tpu_custom_call.1} parent=39 // pred_region
          %249 = dma.done [#allocation6], 2048
        $region52: #{tpu_custom_call.1} parent=39 // pred_fallthru
          _
        %s250 = sand.u32 %s31, 1
        %s251 = scalar_lea.sflag [#allocation3], %s250
        %s252 = sand.u32 %s31, 1
        %s253 = smul.addr %s252, 512
        %s254 = scalar_lea.vmem [#allocation2], %s253
        %p255 = pneg %p44
        %p256 = pneg %p41
        %p257 = pneg %p65
        %p258 = pneg %p62
        %p259 = pneg %p86
        %p260 = pneg %p83
        %p261 = pneg %p107
        %p262 = pneg %p104
        %p263 = pneg %p128
        %p264 = pneg %p125
        %p265 = pneg %p154
        %p266 = pneg %p151
        %s267 = sand.u32 %s141, 1
        %s268 = scalar_lea.sflag [#allocation4], %s267
        %s269 = sand.u32 %s141, 1
        %s270 = smul.addr %s269, 512
        %s271 = scalar_lea.vmem [#allocation8], %s270
        %s272 = smul.u32 64, %s23
        %s273 = smul.u32 64, %s23
        %v274 = vld [vmem:[%s237] sm:$0xff]
        %v275 = vld [vmem:[%s237 + $0x8] sm:$0xff]
        %v276 = vld [vmem:[%s237 + $0x10] sm:$0xff]
        %v277 = vld [vmem:[%s237 + $0x18] sm:$0xff]
        %v278 = vld [vmem:[%s237 + $0x20] sm:$0xff]
        %v279 = vld [vmem:[%s237 + $0x28] sm:$0xff]
        %v280 = vld [vmem:[%s237 + $0x30] sm:$0xff]
        %v281 = vld [vmem:[%s237 + $0x38] sm:$0xff]
        %v282 = vld [vmem:[%s237 + $0x40] sm:$0xff]
        %v283 = vld [vmem:[%s237 + $0x48] sm:$0xff]
        %v284 = vld [vmem:[%s237 + $0x50] sm:$0xff]
        %v285 = vld [vmem:[%s237 + $0x58] sm:$0xff]
        %v286 = vld [vmem:[%s237 + $0x60] sm:$0xff]
        %v287 = vld [vmem:[%s237 + $0x68] sm:$0xff]
        %v288 = vld [vmem:[%s237 + $0x70] sm:$0xff]
        %v289 = vld [vmem:[%s237 + $0x78] sm:$0xff]
        %v290 = vld [vmem:[%s237 + $0x80] sm:$0xff]
        %v291 = vld [vmem:[%s237 + $0x88] sm:$0xff]
        %v292 = vld [vmem:[%s237 + $0x90] sm:$0xff]
        %v293 = vld [vmem:[%s237 + $0x98] sm:$0xff]
        %v294 = vld [vmem:[%s237 + $0xa0] sm:$0xff]
        %v295 = vld [vmem:[%s237 + $0xa8] sm:$0xff]
        %v296 = vld [vmem:[%s237 + $0xb0] sm:$0xff]
        %v297 = vld [vmem:[%s237 + $0xb8] sm:$0xff]
        %v298 = vld [vmem:[%s237 + $0xc0] sm:$0xff]
        %v299 = vld [vmem:[%s237 + $0xc8] sm:$0xff]
        %v300 = vld [vmem:[%s237 + $0xd0] sm:$0xff]
        %v301 = vld [vmem:[%s237 + $0xd8] sm:$0xff]
        %v302 = vld [vmem:[%s237 + $0xe0] sm:$0xff]
        %v303 = vld [vmem:[%s237 + $0xe8] sm:$0xff]
        %v304 = vld [vmem:[%s237 + $0xf0] sm:$0xff]
        %v305 = vld [vmem:[%s237 + $0xf8] sm:$0xff]
        %v306 = vld [vmem:[%s237 + $0x100] sm:$0xff]
        %v307 = vld [vmem:[%s237 + $0x108] sm:$0xff]
        %v308 = vld [vmem:[%s237 + $0x110] sm:$0xff]
        %v309 = vld [vmem:[%s237 + $0x118] sm:$0xff]
        %v310 = vld [vmem:[%s237 + $0x120] sm:$0xff]
        %v311 = vld [vmem:[%s237 + $0x128] sm:$0xff]
        %v312 = vld [vmem:[%s237 + $0x130] sm:$0xff]
        %v313 = vld [vmem:[%s237 + $0x138] sm:$0xff]
        %v314 = vld [vmem:[%s237 + $0x140] sm:$0xff]
        %v315 = vld [vmem:[%s237 + $0x148] sm:$0xff]
        %v316 = vld [vmem:[%s237 + $0x150] sm:$0xff]
        %v317 = vld [vmem:[%s237 + $0x158] sm:$0xff]
        %v318 = vld [vmem:[%s237 + $0x160] sm:$0xff]
        %v319 = vld [vmem:[%s237 + $0x168] sm:$0xff]
        %v320 = vld [vmem:[%s237 + $0x170] sm:$0xff]
        %v321 = vld [vmem:[%s237 + $0x178] sm:$0xff]
        %v322 = vld [vmem:[%s237 + $0x180] sm:$0xff]
        %v323 = vld [vmem:[%s237 + $0x188] sm:$0xff]
        %v324 = vld [vmem:[%s237 + $0x190] sm:$0xff]
        %v325 = vld [vmem:[%s237 + $0x198] sm:$0xff]
        %v326 = vld [vmem:[%s237 + $0x1a0] sm:$0xff]
        %v327 = vld [vmem:[%s237 + $0x1a8] sm:$0xff]
        %v328 = vld [vmem:[%s237 + $0x1b0] sm:$0xff]
        %v329 = vld [vmem:[%s237 + $0x1b8] sm:$0xff]
        %v330 = vld [vmem:[%s237 + $0x1c0] sm:$0xff]
        %v331 = vld [vmem:[%s237 + $0x1c8] sm:$0xff]
        %v332 = vld [vmem:[%s237 + $0x1d0] sm:$0xff]
        %v333 = vld [vmem:[%s237 + $0x1d8] sm:$0xff]
        %v334 = vld [vmem:[%s237 + $0x1e0] sm:$0xff]
        %v335 = vld [vmem:[%s237 + $0x1e8] sm:$0xff]
        %v336 = vld [vmem:[%s237 + $0x1f0] sm:$0xff]
        %v337 = vld [vmem:[%s237 + $0x1f8] sm:$0xff]
        %v338 = vld [vmem:[#allocation5] sm:$0xff]
        %v339 = vld [vmem:[#allocation5 + $0x8] sm:$0xff]
        %v340 = vld [vmem:[#allocation5 + $0x10] sm:$0xff]
        %v341 = vld [vmem:[#allocation5 + $0x18] sm:$0xff]
        %v342 = vld [vmem:[#allocation5 + $0x20] sm:$0xff]
        %v343 = vld [vmem:[#allocation5 + $0x28] sm:$0xff]
        %v344 = vld [vmem:[#allocation5 + $0x30] sm:$0xff]
        %v345 = vld [vmem:[#allocation5 + $0x38] sm:$0xff]
        %v346 = vld [vmem:[#allocation5 + $0x40] sm:$0xff]
        %v347 = vld [vmem:[#allocation5 + $0x48] sm:$0xff]
        %v348 = vld [vmem:[#allocation5 + $0x50] sm:$0xff]
        %v349 = vld [vmem:[#allocation5 + $0x58] sm:$0xff]
        %v350 = vld [vmem:[#allocation5 + $0x60] sm:$0xff]
        %v351 = vld [vmem:[#allocation5 + $0x68] sm:$0xff]
        %v352 = vld [vmem:[#allocation5 + $0x70] sm:$0xff]
        %v353 = vld [vmem:[#allocation5 + $0x78] sm:$0xff]
        %v354 = vld [vmem:[%s2] sm:$0x1]
        %v356 = vlaneseq
        %v357 = vshrl.u32 %v356, 7
        %v358 = vsub.s32 0, %v357
        %v359 = vrot.slane %v354, %v358
        %361 = vmatprep.subr.mxu0 0.0
        %362 = vmatpush1.msra.mxu0 %v353
        %363 = vmatprep.subr.mxu0 0.0
        %364 = vmatpush1.msra.mxu0 %v352
        %365 = vmatprep.subr.mxu0 0.0
        %366 = vmatpush1.msra.mxu0 %v351
        %367 = vmatprep.subr.mxu0 0.0
        %368 = vmatpush1.msra.mxu0 %v350
        %369 = vmatprep.subr.mxu0 0.0
        %370 = vmatpush1.msra.mxu0 %v349
        %371 = vmatprep.subr.mxu0 0.0
        %372 = vmatpush1.msra.mxu0 %v348
        %373 = vmatprep.subr.mxu0 0.0
        %374 = vmatpush1.msra.mxu0 %v347
        %375 = vmatprep.subr.mxu0 0.0
        %376 = vmatpush1.msra.mxu0 %v346
        %377 = vmatprep.subr.mxu0 0.0
        %378 = vmatpush1.msra.mxu0 %v345
        %379 = vmatprep.subr.mxu0 0.0
        %380 = vmatpush1.msra.mxu0 %v344
        %381 = vmatprep.subr.mxu0 0.0
        %382 = vmatpush1.msra.mxu0 %v343
        %383 = vmatprep.subr.mxu0 0.0
        %384 = vmatpush1.msra.mxu0 %v342
        %385 = vmatprep.subr.mxu0 0.0
        %386 = vmatpush1.msra.mxu0 %v341
        %387 = vmatprep.subr.mxu0 0.0
        %388 = vmatpush1.msra.mxu0 %v340
        %389 = vmatprep.subr.mxu0 0.0
        %390 = vmatpush1.msra.mxu0 %v339
        %391 = vmatprep.subr.mxu0 0.0
        %392 = vmatpush1.msra.mxu0 %v338
        %393 = vmatprep.subr.mxu0 0.0
        %394 = vmatpush2.msra.mxu0 0.0
        %395 = vmatprep.subr.mxu0 0.0
        %396 = vmatpush2.msra.mxu0 0.0
        %397 = vmatprep.subr.mxu0 0.0
        %398 = vmatpush2.msra.mxu0 0.0
        %399 = vmatprep.subr.mxu0 0.0
        %400 = vmatpush2.msra.mxu0 0.0
        %401 = vmatprep.subr.mxu0 0.0
        %402 = vmatpush2.msra.mxu0 0.0
        %403 = vmatprep.subr.mxu0 0.0
        %404 = vmatpush2.msra.mxu0 0.0
        %405 = vmatprep.subr.mxu0 0.0
        %406 = vmatpush2.msra.mxu0 0.0
        %407 = vmatprep.subr.mxu0 0.0
        %408 = vmatpush2.msra.mxu0 0.0
        %409 = vmatprep.subr.mxu0 0.0
        %410 = vmatpush2.msra.mxu0 0.0
        %411 = vmatprep.subr.mxu0 0.0
        %412 = vmatpush2.msra.mxu0 0.0
        %413 = vmatprep.subr.mxu0 0.0
        %414 = vmatpush2.msra.mxu0 0.0
        %415 = vmatprep.subr.mxu0 0.0
        %416 = vmatpush2.msra.mxu0 0.0
        %417 = vmatprep.subr.mxu0 0.0
        %418 = vmatpush2.msra.mxu0 0.0
        %419 = vmatprep.subr.mxu0 0.0
        %420 = vmatpush2.msra.mxu0 0.0
        %421 = vmatprep.subr.mxu0 0.0
        %422 = vmatpush2.msra.mxu0 0.0
        %423 = vmatprep.subr.mxu0 0.0
        %424 = vmatpush2.msra.mxu0 0.0
        %425 = vmatprep.mubr.f32.mxu0 0.0
        %426 = vmatmul.mubr.f32.gmra.mxu0 %v274
        %v427 = vpop.f32.mrf.mxu0
        %v428 = vadd.f32 %v359, %v427
        %v429 = vpop.f32.mrf.mxu0
        %430 = vmatprep.mubr.f32.mxu0 0.0
        %431 = vmatmul.mubr.f32.gmra.mxu0 %v275
        %v432 = vpop.f32.mrf.mxu0
        %v433 = vadd.f32 %v359, %v432
        %v434 = vpop.f32.mrf.mxu0
        %435 = vmatprep.mubr.f32.mxu0 0.0
        %436 = vmatmul.mubr.f32.gmra.mxu0 %v276
        %v437 = vpop.f32.mrf.mxu0
        %v438 = vadd.f32 %v359, %v437
        %v439 = vpop.f32.mrf.mxu0
        %440 = vmatprep.mubr.f32.mxu0 0.0
        %441 = vmatmul.mubr.f32.gmra.mxu0 %v277
        %v442 = vpop.f32.mrf.mxu0
        %v443 = vadd.f32 %v359, %v442
        %v444 = vpop.f32.mrf.mxu0
        %445 = vmatprep.mubr.f32.mxu0 0.0
        %446 = vmatmul.mubr.f32.gmra.mxu0 %v278
        %v447 = vpop.f32.mrf.mxu0
        %v448 = vadd.f32 %v359, %v447
        %v449 = vpop.f32.mrf.mxu0
        %450 = vmatprep.mubr.f32.mxu0 0.0
        %451 = vmatmul.mubr.f32.gmra.mxu0 %v279
        %v452 = vpop.f32.mrf.mxu0
        %v453 = vadd.f32 %v359, %v452
        %v454 = vpop.f32.mrf.mxu0
        %455 = vmatprep.mubr.f32.mxu0 0.0
        %456 = vmatmul.mubr.f32.gmra.mxu0 %v280
        %v457 = vpop.f32.mrf.mxu0
        %v458 = vadd.f32 %v359, %v457
        %v459 = vpop.f32.mrf.mxu0
        %460 = vmatprep.mubr.f32.mxu0 0.0
        %461 = vmatmul.mubr.f32.gmra.mxu0 %v281
        %v462 = vpop.f32.mrf.mxu0
        %v463 = vadd.f32 %v359, %v462
        %v464 = vpop.f32.mrf.mxu0
        %465 = vmatprep.mubr.f32.mxu0 0.0
        %466 = vmatmul.mubr.f32.gmra.mxu0 %v282
        %v467 = vpop.f32.mrf.mxu0
        %v468 = vadd.f32 %v359, %v467
        %v469 = vpop.f32.mrf.mxu0
        %470 = vmatprep.mubr.f32.mxu0 0.0
        %471 = vmatmul.mubr.f32.gmra.mxu0 %v283
        %v472 = vpop.f32.mrf.mxu0
        %v473 = vadd.f32 %v359, %v472
        %v474 = vpop.f32.mrf.mxu0
        %475 = vmatprep.mubr.f32.mxu0 0.0
        %476 = vmatmul.mubr.f32.gmra.mxu0 %v284
        %v477 = vpop.f32.mrf.mxu0
        %v478 = vadd.f32 %v359, %v477
        %v479 = vpop.f32.mrf.mxu0
        %480 = vmatprep.mubr.f32.mxu0 0.0
        %481 = vmatmul.mubr.f32.gmra.mxu0 %v285
        %v482 = vpop.f32.mrf.mxu0
        %v483 = vadd.f32 %v359, %v482
        %v484 = vpop.f32.mrf.mxu0
        %485 = vmatprep.mubr.f32.mxu0 0.0
        %486 = vmatmul.mubr.f32.gmra.mxu0 %v286
        %v487 = vpop.f32.mrf.mxu0
        %v488 = vadd.f32 %v359, %v487
        %v489 = vpop.f32.mrf.mxu0
        %490 = vmatprep.mubr.f32.mxu0 0.0
        %491 = vmatmul.mubr.f32.gmra.mxu0 %v287
        %v492 = vpop.f32.mrf.mxu0
        %v493 = vadd.f32 %v359, %v492
        %v494 = vpop.f32.mrf.mxu0
        %495 = vmatprep.mubr.f32.mxu0 0.0
        %496 = vmatmul.mubr.f32.gmra.mxu0 %v288
        %v497 = vpop.f32.mrf.mxu0
        %v498 = vadd.f32 %v359, %v497
        %v499 = vpop.f32.mrf.mxu0
        %500 = vmatprep.mubr.f32.mxu0 0.0
        %501 = vmatmul.mubr.f32.gmra.mxu0 %v289
        %v502 = vpop.f32.mrf.mxu0
        %v503 = vadd.f32 %v359, %v502
        %v504 = vpop.f32.mrf.mxu0
        %505 = vmatprep.mubr.f32.mxu0 0.0
        %506 = vmatmul.mubr.f32.gmra.mxu0 %v290
        %v507 = vpop.f32.mrf.mxu0
        %v508 = vadd.f32 %v359, %v507
        %v509 = vpop.f32.mrf.mxu0
        %510 = vmatprep.mubr.f32.mxu0 0.0
        %511 = vmatmul.mubr.f32.gmra.mxu0 %v291
        %v512 = vpop.f32.mrf.mxu0
        %v513 = vadd.f32 %v359, %v512
        %v514 = vpop.f32.mrf.mxu0
        %515 = vmatprep.mubr.f32.mxu0 0.0
        %516 = vmatmul.mubr.f32.gmra.mxu0 %v292
        %v517 = vpop.f32.mrf.mxu0
        %v518 = vadd.f32 %v359, %v517
        %v519 = vpop.f32.mrf.mxu0
        %520 = vmatprep.mubr.f32.mxu0 0.0
        %521 = vmatmul.mubr.f32.gmra.mxu0 %v293
        %v522 = vpop.f32.mrf.mxu0
        %v523 = vadd.f32 %v359, %v522
        %v524 = vpop.f32.mrf.mxu0
        %525 = vmatprep.mubr.f32.mxu0 0.0
        %526 = vmatmul.mubr.f32.gmra.mxu0 %v294
        %v527 = vpop.f32.mrf.mxu0
        %v528 = vadd.f32 %v359, %v527
        %v529 = vpop.f32.mrf.mxu0
        %530 = vmatprep.mubr.f32.mxu0 0.0
        %531 = vmatmul.mubr.f32.gmra.mxu0 %v295
        %v532 = vpop.f32.mrf.mxu0
        %v533 = vadd.f32 %v359, %v532
        %v534 = vpop.f32.mrf.mxu0
        %535 = vmatprep.mubr.f32.mxu0 0.0
        %536 = vmatmul.mubr.f32.gmra.mxu0 %v296
        %v537 = vpop.f32.mrf.mxu0
        %v538 = vadd.f32 %v359, %v537
        %v539 = vpop.f32.mrf.mxu0
        %540 = vmatprep.mubr.f32.mxu0 0.0
        %541 = vmatmul.mubr.f32.gmra.mxu0 %v297
        %v542 = vpop.f32.mrf.mxu0
        %v543 = vadd.f32 %v359, %v542
        %v544 = vpop.f32.mrf.mxu0
        %545 = vmatprep.mubr.f32.mxu0 0.0
        %546 = vmatmul.mubr.f32.gmra.mxu0 %v298
        %v547 = vpop.f32.mrf.mxu0
        %v548 = vadd.f32 %v359, %v547
        %v549 = vpop.f32.mrf.mxu0
        %550 = vmatprep.mubr.f32.mxu0 0.0
        %551 = vmatmul.mubr.f32.gmra.mxu0 %v299
        %v552 = vpop.f32.mrf.mxu0
        %v553 = vadd.f32 %v359, %v552
        %v554 = vpop.f32.mrf.mxu0
        %555 = vmatprep.mubr.f32.mxu0 0.0
        %556 = vmatmul.mubr.f32.gmra.mxu0 %v300
        %v557 = vpop.f32.mrf.mxu0
        %v558 = vadd.f32 %v359, %v557
        %v559 = vpop.f32.mrf.mxu0
        %560 = vmatprep.mubr.f32.mxu0 0.0
        %561 = vmatmul.mubr.f32.gmra.mxu0 %v301
        %v562 = vpop.f32.mrf.mxu0
        %v563 = vadd.f32 %v359, %v562
        %v564 = vpop.f32.mrf.mxu0
        %565 = vmatprep.mubr.f32.mxu0 0.0
        %566 = vmatmul.mubr.f32.gmra.mxu0 %v302
        %v567 = vpop.f32.mrf.mxu0
        %v568 = vadd.f32 %v359, %v567
        %v569 = vpop.f32.mrf.mxu0
        %570 = vmatprep.mubr.f32.mxu0 0.0
        %571 = vmatmul.mubr.f32.gmra.mxu0 %v303
        %v572 = vpop.f32.mrf.mxu0
        %v573 = vadd.f32 %v359, %v572
        %v574 = vpop.f32.mrf.mxu0
        %575 = vmatprep.mubr.f32.mxu0 0.0
        %576 = vmatmul.mubr.f32.gmra.mxu0 %v304
        %v577 = vpop.f32.mrf.mxu0
        %v578 = vadd.f32 %v359, %v577
        %v579 = vpop.f32.mrf.mxu0
        %580 = vmatprep.mubr.f32.mxu0 0.0
        %581 = vmatmul.mubr.f32.gmra.mxu0 %v305
        %v582 = vpop.f32.mrf.mxu0
        %v583 = vadd.f32 %v359, %v582
        %v584 = vpop.f32.mrf.mxu0
        %585 = vmatprep.mubr.f32.mxu0 0.0
        %586 = vmatmul.mubr.f32.gmra.mxu0 %v306
        %v587 = vpop.f32.mrf.mxu0
        %v588 = vadd.f32 %v359, %v587
        %v589 = vpop.f32.mrf.mxu0
        %590 = vmatprep.mubr.f32.mxu0 0.0
        %591 = vmatmul.mubr.f32.gmra.mxu0 %v307
        %v592 = vpop.f32.mrf.mxu0
        %v593 = vadd.f32 %v359, %v592
        %v594 = vpop.f32.mrf.mxu0
        %595 = vmatprep.mubr.f32.mxu0 0.0
        %596 = vmatmul.mubr.f32.gmra.mxu0 %v308
        %v597 = vpop.f32.mrf.mxu0
        %v598 = vadd.f32 %v359, %v597
        %v599 = vpop.f32.mrf.mxu0
        %600 = vmatprep.mubr.f32.mxu0 0.0
        %601 = vmatmul.mubr.f32.gmra.mxu0 %v309
        %v602 = vpop.f32.mrf.mxu0
        %v603 = vadd.f32 %v359, %v602
        %v604 = vpop.f32.mrf.mxu0
        %605 = vmatprep.mubr.f32.mxu0 0.0
        %606 = vmatmul.mubr.f32.gmra.mxu0 %v310
        %v607 = vpop.f32.mrf.mxu0
        %v608 = vadd.f32 %v359, %v607
        %v609 = vpop.f32.mrf.mxu0
        %610 = vmatprep.mubr.f32.mxu0 0.0
        %611 = vmatmul.mubr.f32.gmra.mxu0 %v311
        %v612 = vpop.f32.mrf.mxu0
        %v613 = vadd.f32 %v359, %v612
        %v614 = vpop.f32.mrf.mxu0
        %615 = vmatprep.mubr.f32.mxu0 0.0
        %616 = vmatmul.mubr.f32.gmra.mxu0 %v312
        %v617 = vpop.f32.mrf.mxu0
        %v618 = vadd.f32 %v359, %v617
        %v619 = vpop.f32.mrf.mxu0
        %620 = vmatprep.mubr.f32.mxu0 0.0
        %621 = vmatmul.mubr.f32.gmra.mxu0 %v313
        %v622 = vpop.f32.mrf.mxu0
        %v623 = vadd.f32 %v359, %v622
        %v624 = vpop.f32.mrf.mxu0
        %625 = vmatprep.mubr.f32.mxu0 0.0
        %626 = vmatmul.mubr.f32.gmra.mxu0 %v314
        %v627 = vpop.f32.mrf.mxu0
        %v628 = vadd.f32 %v359, %v627
        %v629 = vpop.f32.mrf.mxu0
        %630 = vmatprep.mubr.f32.mxu0 0.0
        %631 = vmatmul.mubr.f32.gmra.mxu0 %v315
        %v632 = vpop.f32.mrf.mxu0
        %v633 = vadd.f32 %v359, %v632
        %v634 = vpop.f32.mrf.mxu0
        %635 = vmatprep.mubr.f32.mxu0 0.0
        %636 = vmatmul.mubr.f32.gmra.mxu0 %v316
        %v637 = vpop.f32.mrf.mxu0
        %v638 = vadd.f32 %v359, %v637
        %v639 = vpop.f32.mrf.mxu0
        %640 = vmatprep.mubr.f32.mxu0 0.0
        %641 = vmatmul.mubr.f32.gmra.mxu0 %v317
        %v642 = vpop.f32.mrf.mxu0
        %v643 = vadd.f32 %v359, %v642
        %v644 = vpop.f32.mrf.mxu0
        %645 = vmatprep.mubr.f32.mxu0 0.0
        %646 = vmatmul.mubr.f32.gmra.mxu0 %v318
        %v647 = vpop.f32.mrf.mxu0
        %v648 = vadd.f32 %v359, %v647
        %v649 = vpop.f32.mrf.mxu0
        %650 = vmatprep.mubr.f32.mxu0 0.0
        %651 = vmatmul.mubr.f32.gmra.mxu0 %v319
        %v652 = vpop.f32.mrf.mxu0
        %v653 = vadd.f32 %v359, %v652
        %v654 = vpop.f32.mrf.mxu0
        %655 = vmatprep.mubr.f32.mxu0 0.0
        %656 = vmatmul.mubr.f32.gmra.mxu0 %v320
        %v657 = vpop.f32.mrf.mxu0
        %v658 = vadd.f32 %v359, %v657
        %v659 = vpop.f32.mrf.mxu0
        %660 = vmatprep.mubr.f32.mxu0 0.0
        %661 = vmatmul.mubr.f32.gmra.mxu0 %v321
        %v662 = vpop.f32.mrf.mxu0
        %v663 = vadd.f32 %v359, %v662
        %v664 = vpop.f32.mrf.mxu0
        %665 = vmatprep.mubr.f32.mxu0 0.0
        %666 = vmatmul.mubr.f32.gmra.mxu0 %v322
        %v667 = vpop.f32.mrf.mxu0
        %v668 = vadd.f32 %v359, %v667
        %v669 = vpop.f32.mrf.mxu0
        %670 = vmatprep.mubr.f32.mxu0 0.0
        %671 = vmatmul.mubr.f32.gmra.mxu0 %v323
        %v672 = vpop.f32.mrf.mxu0
        %v673 = vadd.f32 %v359, %v672
        %v674 = vpop.f32.mrf.mxu0
        %675 = vmatprep.mubr.f32.mxu0 0.0
        %676 = vmatmul.mubr.f32.gmra.mxu0 %v324
        %v677 = vpop.f32.mrf.mxu0
        %v678 = vadd.f32 %v359, %v677
        %v679 = vpop.f32.mrf.mxu0
        %680 = vmatprep.mubr.f32.mxu0 0.0
        %681 = vmatmul.mubr.f32.gmra.mxu0 %v325
        %v682 = vpop.f32.mrf.mxu0
        %v683 = vadd.f32 %v359, %v682
        %v684 = vpop.f32.mrf.mxu0
        %685 = vmatprep.mubr.f32.mxu0 0.0
        %686 = vmatmul.mubr.f32.gmra.mxu0 %v326
        %v687 = vpop.f32.mrf.mxu0
        %v688 = vadd.f32 %v359, %v687
        %v689 = vpop.f32.mrf.mxu0
        %690 = vmatprep.mubr.f32.mxu0 0.0
        %691 = vmatmul.mubr.f32.gmra.mxu0 %v327
        %v692 = vpop.f32.mrf.mxu0
        %v693 = vadd.f32 %v359, %v692
        %v694 = vpop.f32.mrf.mxu0
        %695 = vmatprep.mubr.f32.mxu0 0.0
        %696 = vmatmul.mubr.f32.gmra.mxu0 %v328
        %v697 = vpop.f32.mrf.mxu0
        %v698 = vadd.f32 %v359, %v697
        %v699 = vpop.f32.mrf.mxu0
        %700 = vmatprep.mubr.f32.mxu0 0.0
        %701 = vmatmul.mubr.f32.gmra.mxu0 %v329
        %v702 = vpop.f32.mrf.mxu0
        %v703 = vadd.f32 %v359, %v702
        %v704 = vpop.f32.mrf.mxu0
        %705 = vmatprep.mubr.f32.mxu0 0.0
        %706 = vmatmul.mubr.f32.gmra.mxu0 %v330
        %v707 = vpop.f32.mrf.mxu0
        %v708 = vadd.f32 %v359, %v707
        %v709 = vpop.f32.mrf.mxu0
        %710 = vmatprep.mubr.f32.mxu0 0.0
        %711 = vmatmul.mubr.f32.gmra.mxu0 %v331
        %v712 = vpop.f32.mrf.mxu0
        %v713 = vadd.f32 %v359, %v712
        %v714 = vpop.f32.mrf.mxu0
        %715 = vmatprep.mubr.f32.mxu0 0.0
        %716 = vmatmul.mubr.f32.gmra.mxu0 %v332
        %v717 = vpop.f32.mrf.mxu0
        %v718 = vadd.f32 %v359, %v717
        %v719 = vpop.f32.mrf.mxu0
        %720 = vmatprep.mubr.f32.mxu0 0.0
        %721 = vmatmul.mubr.f32.gmra.mxu0 %v333
        %v722 = vpop.f32.mrf.mxu0
        %v723 = vadd.f32 %v359, %v722
        %v724 = vpop.f32.mrf.mxu0
        %725 = vmatprep.mubr.f32.mxu0 0.0
        %726 = vmatmul.mubr.f32.gmra.mxu0 %v334
        %v727 = vpop.f32.mrf.mxu0
        %v728 = vadd.f32 %v359, %v727
        %v729 = vpop.f32.mrf.mxu0
        %730 = vmatprep.mubr.f32.mxu0 0.0
        %731 = vmatmul.mubr.f32.gmra.mxu0 %v335
        %v732 = vpop.f32.mrf.mxu0
        %v733 = vadd.f32 %v359, %v732
        %v734 = vpop.f32.mrf.mxu0
        %735 = vmatprep.mubr.f32.mxu0 0.0
        %736 = vmatmul.mubr.f32.gmra.mxu0 %v336
        %v737 = vpop.f32.mrf.mxu0
        %v738 = vadd.f32 %v359, %v737
        %v739 = vpop.f32.mrf.mxu0
        %740 = vmatprep.mubr.f32.mxu0 0.0
        %741 = vmatmul.mubr.f32.gmra.mxu0 %v337
        %v742 = vpop.f32.mrf.mxu0
        %v743 = vadd.f32 %v359, %v742
        %v744 = vpop.f32.mrf.mxu0
        %745 = vdwg.mxu0
        %v746 = vmax.f32 %v428, 0.0
        %v747 = vmax.f32 %v433, 0.0
        %v748 = vmax.f32 %v438, 0.0
        %v749 = vmax.f32 %v443, 0.0
        %v750 = vmax.f32 %v448, 0.0
        %v751 = vmax.f32 %v453, 0.0
        %v752 = vmax.f32 %v458, 0.0
        %v753 = vmax.f32 %v463, 0.0
        %v754 = vmax.f32 %v468, 0.0
        %v755 = vmax.f32 %v473, 0.0
        %v756 = vmax.f32 %v478, 0.0
        %v757 = vmax.f32 %v483, 0.0
        %v758 = vmax.f32 %v488, 0.0
        %v759 = vmax.f32 %v493, 0.0
        %v760 = vmax.f32 %v498, 0.0
        %v761 = vmax.f32 %v503, 0.0
        %v762 = vmax.f32 %v508, 0.0
        %v763 = vmax.f32 %v513, 0.0
        %v764 = vmax.f32 %v518, 0.0
        %v765 = vmax.f32 %v523, 0.0
        %v766 = vmax.f32 %v528, 0.0
        %v767 = vmax.f32 %v533, 0.0
        %v768 = vmax.f32 %v538, 0.0
        %v769 = vmax.f32 %v543, 0.0
        %v770 = vmax.f32 %v548, 0.0
        %v771 = vmax.f32 %v553, 0.0
        %v772 = vmax.f32 %v558, 0.0
        %v773 = vmax.f32 %v563, 0.0
        %v774 = vmax.f32 %v568, 0.0
        %v775 = vmax.f32 %v573, 0.0
        %v776 = vmax.f32 %v578, 0.0
        %v777 = vmax.f32 %v583, 0.0
        %v778 = vmax.f32 %v588, 0.0
        %v779 = vmax.f32 %v593, 0.0
        %v780 = vmax.f32 %v598, 0.0
        %v781 = vmax.f32 %v603, 0.0
        %v782 = vmax.f32 %v608, 0.0
        %v783 = vmax.f32 %v613, 0.0
        %v784 = vmax.f32 %v618, 0.0
        %v785 = vmax.f32 %v623, 0.0
        %v786 = vmax.f32 %v628, 0.0
        %v787 = vmax.f32 %v633, 0.0
        %v788 = vmax.f32 %v638, 0.0
        %v789 = vmax.f32 %v643, 0.0
        %v790 = vmax.f32 %v648, 0.0
        %v791 = vmax.f32 %v653, 0.0
        %v792 = vmax.f32 %v658, 0.0
        %v793 = vmax.f32 %v663, 0.0
        %v794 = vmax.f32 %v668, 0.0
        %v795 = vmax.f32 %v673, 0.0
        %v796 = vmax.f32 %v678, 0.0
        %v797 = vmax.f32 %v683, 0.0
        %v798 = vmax.f32 %v688, 0.0
        %v799 = vmax.f32 %v693, 0.0
        %v800 = vmax.f32 %v698, 0.0
        %v801 = vmax.f32 %v703, 0.0
        %v802 = vmax.f32 %v708, 0.0
        %v803 = vmax.f32 %v713, 0.0
        %v804 = vmax.f32 %v718, 0.0
        %v805 = vmax.f32 %v723, 0.0
        %v806 = vmax.f32 %v728, 0.0
        %v807 = vmax.f32 %v733, 0.0
        %v808 = vmax.f32 %v738, 0.0
        %v809 = vmax.f32 %v743, 0.0
        %v810 = vld [vmem:[#allocation7] sm:$0xff]
        %v811 = vld [vmem:[#allocation7 + $0x8] sm:$0xff]
        %v812 = vld [vmem:[#allocation7 + $0x10] sm:$0xff]
        %v813 = vld [vmem:[#allocation7 + $0x18] sm:$0xff]
        %v814 = vld [vmem:[#allocation7 + $0x20] sm:$0xff]
        %v815 = vld [vmem:[#allocation7 + $0x28] sm:$0xff]
        %v816 = vld [vmem:[#allocation7 + $0x30] sm:$0xff]
        %v817 = vld [vmem:[#allocation7 + $0x38] sm:$0xff]
        %v818 = vld [vmem:[#allocation7 + $0x40] sm:$0xff]
        %v819 = vld [vmem:[#allocation7 + $0x48] sm:$0xff]
        %v820 = vld [vmem:[#allocation7 + $0x50] sm:$0xff]
        %v821 = vld [vmem:[#allocation7 + $0x58] sm:$0xff]
        %v822 = vld [vmem:[#allocation7 + $0x60] sm:$0xff]
        %v823 = vld [vmem:[#allocation7 + $0x68] sm:$0xff]
        %v824 = vld [vmem:[#allocation7 + $0x70] sm:$0xff]
        %v825 = vld [vmem:[#allocation7 + $0x78] sm:$0xff]
        %v826 = vld [vmem:[%s4] sm:$0x1]
        %v828 = vlaneseq
        %v829 = vshrl.u32 %v828, 7
        %v830 = vsub.s32 0, %v829
        %v831 = vrot.slane %v826, %v830
        %833 = vmatprep.subr.mxu0 0.0
        %834 = vmatpush1.msra.mxu0 %v825
        %835 = vmatprep.subr.mxu0 0.0
        %836 = vmatpush1.msra.mxu0 %v824
        %837 = vmatprep.subr.mxu0 0.0
        %838 = vmatpush1.msra.mxu0 %v823
        %839 = vmatprep.subr.mxu0 0.0
        %840 = vmatpush1.msra.mxu0 %v822
        %841 = vmatprep.subr.mxu0 0.0
        %842 = vmatpush1.msra.mxu0 %v821
        %843 = vmatprep.subr.mxu0 0.0
        %844 = vmatpush1.msra.mxu0 %v820
        %845 = vmatprep.subr.mxu0 0.0
        %846 = vmatpush1.msra.mxu0 %v819
        %847 = vmatprep.subr.mxu0 0.0
        %848 = vmatpush1.msra.mxu0 %v818
        %849 = vmatprep.subr.mxu0 0.0
        %850 = vmatpush1.msra.mxu0 %v817
        %851 = vmatprep.subr.mxu0 0.0
        %852 = vmatpush1.msra.mxu0 %v816
        %853 = vmatprep.subr.mxu0 0.0
        %854 = vmatpush1.msra.mxu0 %v815
        %855 = vmatprep.subr.mxu0 0.0
        %856 = vmatpush1.msra.mxu0 %v814
        %857 = vmatprep.subr.mxu0 0.0
        %858 = vmatpush1.msra.mxu0 %v813
        %859 = vmatprep.subr.mxu0 0.0
        %860 = vmatpush1.msra.mxu0 %v812
        %861 = vmatprep.subr.mxu0 0.0
        %862 = vmatpush1.msra.mxu0 %v811
        %863 = vmatprep.subr.mxu0 0.0
        %864 = vmatpush1.msra.mxu0 %v810
        %865 = vmatprep.subr.mxu0 0.0
        %866 = vmatpush2.msra.mxu0 0.0
        %867 = vmatprep.subr.mxu0 0.0
        %868 = vmatpush2.msra.mxu0 0.0
        %869 = vmatprep.subr.mxu0 0.0
        %870 = vmatpush2.msra.mxu0 0.0
        %871 = vmatprep.subr.mxu0 0.0
        %872 = vmatpush2.msra.mxu0 0.0
        %873 = vmatprep.subr.mxu0 0.0
        %874 = vmatpush2.msra.mxu0 0.0
        %875 = vmatprep.subr.mxu0 0.0
        %876 = vmatpush2.msra.mxu0 0.0
        %877 = vmatprep.subr.mxu0 0.0
        %878 = vmatpush2.msra.mxu0 0.0
        %879 = vmatprep.subr.mxu0 0.0
        %880 = vmatpush2.msra.mxu0 0.0
        %881 = vmatprep.subr.mxu0 0.0
        %882 = vmatpush2.msra.mxu0 0.0
        %883 = vmatprep.subr.mxu0 0.0
        %884 = vmatpush2.msra.mxu0 0.0
        %885 = vmatprep.subr.mxu0 0.0
        %886 = vmatpush2.msra.mxu0 0.0
        %887 = vmatprep.subr.mxu0 0.0
        %888 = vmatpush2.msra.mxu0 0.0
        %889 = vmatprep.subr.mxu0 0.0
        %890 = vmatpush2.msra.mxu0 0.0
        %891 = vmatprep.subr.mxu0 0.0
        %892 = vmatpush2.msra.mxu0 0.0
        %893 = vmatprep.subr.mxu0 0.0
        %894 = vmatpush2.msra.mxu0 0.0
        %895 = vmatprep.subr.mxu0 0.0
        %896 = vmatpush2.msra.mxu0 0.0
        %897 = vmatprep.mubr.f32.mxu0 0.0
        %898 = vmatmul.mubr.f32.gmra.mxu0 %v746
        %v899 = vpop.f32.mrf.mxu0
        %v900 = vadd.f32 %v831, %v899
        %v901 = vpop.f32.mrf.mxu0
        %902 = vmatprep.mubr.f32.mxu0 0.0
        %903 = vmatmul.mubr.f32.gmra.mxu0 %v747
        %v904 = vpop.f32.mrf.mxu0
        %v905 = vadd.f32 %v831, %v904
        %v906 = vpop.f32.mrf.mxu0
        %907 = vmatprep.mubr.f32.mxu0 0.0
        %908 = vmatmul.mubr.f32.gmra.mxu0 %v748
        %v909 = vpop.f32.mrf.mxu0
        %v910 = vadd.f32 %v831, %v909
        %v911 = vpop.f32.mrf.mxu0
        %912 = vmatprep.mubr.f32.mxu0 0.0
        %913 = vmatmul.mubr.f32.gmra.mxu0 %v749
        %v914 = vpop.f32.mrf.mxu0
        %v915 = vadd.f32 %v831, %v914
        %v916 = vpop.f32.mrf.mxu0
        %917 = vmatprep.mubr.f32.mxu0 0.0
        %918 = vmatmul.mubr.f32.gmra.mxu0 %v750
        %v919 = vpop.f32.mrf.mxu0
        %v920 = vadd.f32 %v831, %v919
        %v921 = vpop.f32.mrf.mxu0
        %922 = vmatprep.mubr.f32.mxu0 0.0
        %923 = vmatmul.mubr.f32.gmra.mxu0 %v751
        %v924 = vpop.f32.mrf.mxu0
        %v925 = vadd.f32 %v831, %v924
        %v926 = vpop.f32.mrf.mxu0
        %927 = vmatprep.mubr.f32.mxu0 0.0
        %928 = vmatmul.mubr.f32.gmra.mxu0 %v752
        %v929 = vpop.f32.mrf.mxu0
        %v930 = vadd.f32 %v831, %v929
        %v931 = vpop.f32.mrf.mxu0
        %932 = vmatprep.mubr.f32.mxu0 0.0
        %933 = vmatmul.mubr.f32.gmra.mxu0 %v753
        %v934 = vpop.f32.mrf.mxu0
        %v935 = vadd.f32 %v831, %v934
        %v936 = vpop.f32.mrf.mxu0
        %937 = vmatprep.mubr.f32.mxu0 0.0
        %938 = vmatmul.mubr.f32.gmra.mxu0 %v754
        %v939 = vpop.f32.mrf.mxu0
        %v940 = vadd.f32 %v831, %v939
        %v941 = vpop.f32.mrf.mxu0
        %942 = vmatprep.mubr.f32.mxu0 0.0
        %943 = vmatmul.mubr.f32.gmra.mxu0 %v755
        %v944 = vpop.f32.mrf.mxu0
        %v945 = vadd.f32 %v831, %v944
        %v946 = vpop.f32.mrf.mxu0
        %947 = vmatprep.mubr.f32.mxu0 0.0
        %948 = vmatmul.mubr.f32.gmra.mxu0 %v756
        %v949 = vpop.f32.mrf.mxu0
        %v950 = vadd.f32 %v831, %v949
        %v951 = vpop.f32.mrf.mxu0
        %952 = vmatprep.mubr.f32.mxu0 0.0
        %953 = vmatmul.mubr.f32.gmra.mxu0 %v757
        %v954 = vpop.f32.mrf.mxu0
        %v955 = vadd.f32 %v831, %v954
        %v956 = vpop.f32.mrf.mxu0
        %957 = vmatprep.mubr.f32.mxu0 0.0
        %958 = vmatmul.mubr.f32.gmra.mxu0 %v758
        %v959 = vpop.f32.mrf.mxu0
        %v960 = vadd.f32 %v831, %v959
        %v961 = vpop.f32.mrf.mxu0
        %962 = vmatprep.mubr.f32.mxu0 0.0
        %963 = vmatmul.mubr.f32.gmra.mxu0 %v759
        %v964 = vpop.f32.mrf.mxu0
        %v965 = vadd.f32 %v831, %v964
        %v966 = vpop.f32.mrf.mxu0
        %967 = vmatprep.mubr.f32.mxu0 0.0
        %968 = vmatmul.mubr.f32.gmra.mxu0 %v760
        %v969 = vpop.f32.mrf.mxu0
        %v970 = vadd.f32 %v831, %v969
        %v971 = vpop.f32.mrf.mxu0
        %972 = vmatprep.mubr.f32.mxu0 0.0
        %973 = vmatmul.mubr.f32.gmra.mxu0 %v761
        %v974 = vpop.f32.mrf.mxu0
        %v975 = vadd.f32 %v831, %v974
        %v976 = vpop.f32.mrf.mxu0
        %977 = vmatprep.mubr.f32.mxu0 0.0
        %978 = vmatmul.mubr.f32.gmra.mxu0 %v762
        %v979 = vpop.f32.mrf.mxu0
        %v980 = vadd.f32 %v831, %v979
        %v981 = vpop.f32.mrf.mxu0
        %982 = vmatprep.mubr.f32.mxu0 0.0
        %983 = vmatmul.mubr.f32.gmra.mxu0 %v763
        %v984 = vpop.f32.mrf.mxu0
        %v985 = vadd.f32 %v831, %v984
        %v986 = vpop.f32.mrf.mxu0
        %987 = vmatprep.mubr.f32.mxu0 0.0
        %988 = vmatmul.mubr.f32.gmra.mxu0 %v764
        %v989 = vpop.f32.mrf.mxu0
        %v990 = vadd.f32 %v831, %v989
        %v991 = vpop.f32.mrf.mxu0
        %992 = vmatprep.mubr.f32.mxu0 0.0
        %993 = vmatmul.mubr.f32.gmra.mxu0 %v765
        %v994 = vpop.f32.mrf.mxu0
        %v995 = vadd.f32 %v831, %v994
        %v996 = vpop.f32.mrf.mxu0
        %997 = vmatprep.mubr.f32.mxu0 0.0
        %998 = vmatmul.mubr.f32.gmra.mxu0 %v766
        %v999 = vpop.f32.mrf.mxu0
        %v1000 = vadd.f32 %v831, %v999
        %v1001 = vpop.f32.mrf.mxu0
        %1002 = vmatprep.mubr.f32.mxu0 0.0
        %1003 = vmatmul.mubr.f32.gmra.mxu0 %v767
        %v1004 = vpop.f32.mrf.mxu0
        %v1005 = vadd.f32 %v831, %v1004
        %v1006 = vpop.f32.mrf.mxu0
        %1007 = vmatprep.mubr.f32.mxu0 0.0
        %1008 = vmatmul.mubr.f32.gmra.mxu0 %v768
        %v1009 = vpop.f32.mrf.mxu0
        %v1010 = vadd.f32 %v831, %v1009
        %v1011 = vpop.f32.mrf.mxu0
        %1012 = vmatprep.mubr.f32.mxu0 0.0
        %1013 = vmatmul.mubr.f32.gmra.mxu0 %v769
        %v1014 = vpop.f32.mrf.mxu0
        %v1015 = vadd.f32 %v831, %v1014
        %v1016 = vpop.f32.mrf.mxu0
        %1017 = vmatprep.mubr.f32.mxu0 0.0
        %1018 = vmatmul.mubr.f32.gmra.mxu0 %v770
        %v1019 = vpop.f32.mrf.mxu0
        %v1020 = vadd.f32 %v831, %v1019
        %v1021 = vpop.f32.mrf.mxu0
        %1022 = vmatprep.mubr.f32.mxu0 0.0
        %1023 = vmatmul.mubr.f32.gmra.mxu0 %v771
        %v1024 = vpop.f32.mrf.mxu0
        %v1025 = vadd.f32 %v831, %v1024
        %v1026 = vpop.f32.mrf.mxu0
        %1027 = vmatprep.mubr.f32.mxu0 0.0
        %1028 = vmatmul.mubr.f32.gmra.mxu0 %v772
        %v1029 = vpop.f32.mrf.mxu0
        %v1030 = vadd.f32 %v831, %v1029
        %v1031 = vpop.f32.mrf.mxu0
        %1032 = vmatprep.mubr.f32.mxu0 0.0
        %1033 = vmatmul.mubr.f32.gmra.mxu0 %v773
        %v1034 = vpop.f32.mrf.mxu0
        %v1035 = vadd.f32 %v831, %v1034
        %v1036 = vpop.f32.mrf.mxu0
        %1037 = vmatprep.mubr.f32.mxu0 0.0
        %1038 = vmatmul.mubr.f32.gmra.mxu0 %v774
        %v1039 = vpop.f32.mrf.mxu0
        %v1040 = vadd.f32 %v831, %v1039
        %v1041 = vpop.f32.mrf.mxu0
        %1042 = vmatprep.mubr.f32.mxu0 0.0
        %1043 = vmatmul.mubr.f32.gmra.mxu0 %v775
        %v1044 = vpop.f32.mrf.mxu0
        %v1045 = vadd.f32 %v831, %v1044
        %v1046 = vpop.f32.mrf.mxu0
        %1047 = vmatprep.mubr.f32.mxu0 0.0
        %1048 = vmatmul.mubr.f32.gmra.mxu0 %v776
        %v1049 = vpop.f32.mrf.mxu0
        %v1050 = vadd.f32 %v831, %v1049
        %v1051 = vpop.f32.mrf.mxu0
        %1052 = vmatprep.mubr.f32.mxu0 0.0
        %1053 = vmatmul.mubr.f32.gmra.mxu0 %v777
        %v1054 = vpop.f32.mrf.mxu0
        %v1055 = vadd.f32 %v831, %v1054
        %v1056 = vpop.f32.mrf.mxu0
        %1057 = vmatprep.mubr.f32.mxu0 0.0
        %1058 = vmatmul.mubr.f32.gmra.mxu0 %v778
        %v1059 = vpop.f32.mrf.mxu0
        %v1060 = vadd.f32 %v831, %v1059
        %v1061 = vpop.f32.mrf.mxu0
        %1062 = vmatprep.mubr.f32.mxu0 0.0
        %1063 = vmatmul.mubr.f32.gmra.mxu0 %v779
        %v1064 = vpop.f32.mrf.mxu0
        %v1065 = vadd.f32 %v831, %v1064
        %v1066 = vpop.f32.mrf.mxu0
        %1067 = vmatprep.mubr.f32.mxu0 0.0
        %1068 = vmatmul.mubr.f32.gmra.mxu0 %v780
        %v1069 = vpop.f32.mrf.mxu0
        %v1070 = vadd.f32 %v831, %v1069
        %v1071 = vpop.f32.mrf.mxu0
        %1072 = vmatprep.mubr.f32.mxu0 0.0
        %1073 = vmatmul.mubr.f32.gmra.mxu0 %v781
        %v1074 = vpop.f32.mrf.mxu0
        %v1075 = vadd.f32 %v831, %v1074
        %v1076 = vpop.f32.mrf.mxu0
        %1077 = vmatprep.mubr.f32.mxu0 0.0
        %1078 = vmatmul.mubr.f32.gmra.mxu0 %v782
        %v1079 = vpop.f32.mrf.mxu0
        %v1080 = vadd.f32 %v831, %v1079
        %v1081 = vpop.f32.mrf.mxu0
        %1082 = vmatprep.mubr.f32.mxu0 0.0
        %1083 = vmatmul.mubr.f32.gmra.mxu0 %v783
        %v1084 = vpop.f32.mrf.mxu0
        %v1085 = vadd.f32 %v831, %v1084
        %v1086 = vpop.f32.mrf.mxu0
        %1087 = vmatprep.mubr.f32.mxu0 0.0
        %1088 = vmatmul.mubr.f32.gmra.mxu0 %v784
        %v1089 = vpop.f32.mrf.mxu0
        %v1090 = vadd.f32 %v831, %v1089
        %v1091 = vpop.f32.mrf.mxu0
        %1092 = vmatprep.mubr.f32.mxu0 0.0
        %1093 = vmatmul.mubr.f32.gmra.mxu0 %v785
        %v1094 = vpop.f32.mrf.mxu0
        %v1095 = vadd.f32 %v831, %v1094
        %v1096 = vpop.f32.mrf.mxu0
        %1097 = vmatprep.mubr.f32.mxu0 0.0
        %1098 = vmatmul.mubr.f32.gmra.mxu0 %v786
        %v1099 = vpop.f32.mrf.mxu0
        %v1100 = vadd.f32 %v831, %v1099
        %v1101 = vpop.f32.mrf.mxu0
        %1102 = vmatprep.mubr.f32.mxu0 0.0
        %1103 = vmatmul.mubr.f32.gmra.mxu0 %v787
        %v1104 = vpop.f32.mrf.mxu0
        %v1105 = vadd.f32 %v831, %v1104
        %v1106 = vpop.f32.mrf.mxu0
        %1107 = vmatprep.mubr.f32.mxu0 0.0
        %1108 = vmatmul.mubr.f32.gmra.mxu0 %v788
        %v1109 = vpop.f32.mrf.mxu0
        %v1110 = vadd.f32 %v831, %v1109
        %v1111 = vpop.f32.mrf.mxu0
        %1112 = vmatprep.mubr.f32.mxu0 0.0
        %1113 = vmatmul.mubr.f32.gmra.mxu0 %v789
        %v1114 = vpop.f32.mrf.mxu0
        %v1115 = vadd.f32 %v831, %v1114
        %v1116 = vpop.f32.mrf.mxu0
        %1117 = vmatprep.mubr.f32.mxu0 0.0
        %1118 = vmatmul.mubr.f32.gmra.mxu0 %v790
        %v1119 = vpop.f32.mrf.mxu0
        %v1120 = vadd.f32 %v831, %v1119
        %v1121 = vpop.f32.mrf.mxu0
        %1122 = vmatprep.mubr.f32.mxu0 0.0
        %1123 = vmatmul.mubr.f32.gmra.mxu0 %v791
        %v1124 = vpop.f32.mrf.mxu0
        %v1125 = vadd.f32 %v831, %v1124
        %v1126 = vpop.f32.mrf.mxu0
        %1127 = vmatprep.mubr.f32.mxu0 0.0
        %1128 = vmatmul.mubr.f32.gmra.mxu0 %v792
        %v1129 = vpop.f32.mrf.mxu0
        %v1130 = vadd.f32 %v831, %v1129
        %v1131 = vpop.f32.mrf.mxu0
        %1132 = vmatprep.mubr.f32.mxu0 0.0
        %1133 = vmatmul.mubr.f32.gmra.mxu0 %v793
        %v1134 = vpop.f32.mrf.mxu0
        %v1135 = vadd.f32 %v831, %v1134
        %v1136 = vpop.f32.mrf.mxu0
        %1137 = vmatprep.mubr.f32.mxu0 0.0
        %1138 = vmatmul.mubr.f32.gmra.mxu0 %v794
        %v1139 = vpop.f32.mrf.mxu0
        %v1140 = vadd.f32 %v831, %v1139
        %v1141 = vpop.f32.mrf.mxu0
        %1142 = vmatprep.mubr.f32.mxu0 0.0
        %1143 = vmatmul.mubr.f32.gmra.mxu0 %v795
        %v1144 = vpop.f32.mrf.mxu0
        %v1145 = vadd.f32 %v831, %v1144
        %v1146 = vpop.f32.mrf.mxu0
        %1147 = vmatprep.mubr.f32.mxu0 0.0
        %1148 = vmatmul.mubr.f32.gmra.mxu0 %v796
        %v1149 = vpop.f32.mrf.mxu0
        %v1150 = vadd.f32 %v831, %v1149
        %v1151 = vpop.f32.mrf.mxu0
        %1152 = vmatprep.mubr.f32.mxu0 0.0
        %1153 = vmatmul.mubr.f32.gmra.mxu0 %v797
        %v1154 = vpop.f32.mrf.mxu0
        %v1155 = vadd.f32 %v831, %v1154
        %v1156 = vpop.f32.mrf.mxu0
        %1157 = vmatprep.mubr.f32.mxu0 0.0
        %1158 = vmatmul.mubr.f32.gmra.mxu0 %v798
        %v1159 = vpop.f32.mrf.mxu0
        %v1160 = vadd.f32 %v831, %v1159
        %v1161 = vpop.f32.mrf.mxu0
        %1162 = vmatprep.mubr.f32.mxu0 0.0
        %1163 = vmatmul.mubr.f32.gmra.mxu0 %v799
        %v1164 = vpop.f32.mrf.mxu0
        %v1165 = vadd.f32 %v831, %v1164
        %v1166 = vpop.f32.mrf.mxu0
        %1167 = vmatprep.mubr.f32.mxu0 0.0
        %1168 = vmatmul.mubr.f32.gmra.mxu0 %v800
        %v1169 = vpop.f32.mrf.mxu0
        %v1170 = vadd.f32 %v831, %v1169
        %v1171 = vpop.f32.mrf.mxu0
        %1172 = vmatprep.mubr.f32.mxu0 0.0
        %1173 = vmatmul.mubr.f32.gmra.mxu0 %v801
        %v1174 = vpop.f32.mrf.mxu0
        %v1175 = vadd.f32 %v831, %v1174
        %v1176 = vpop.f32.mrf.mxu0
        %1177 = vmatprep.mubr.f32.mxu0 0.0
        %1178 = vmatmul.mubr.f32.gmra.mxu0 %v802
        %v1179 = vpop.f32.mrf.mxu0
        %v1180 = vadd.f32 %v831, %v1179
        %v1181 = vpop.f32.mrf.mxu0
        %1182 = vmatprep.mubr.f32.mxu0 0.0
        %1183 = vmatmul.mubr.f32.gmra.mxu0 %v803
        %v1184 = vpop.f32.mrf.mxu0
        %v1185 = vadd.f32 %v831, %v1184
        %v1186 = vpop.f32.mrf.mxu0
        %1187 = vmatprep.mubr.f32.mxu0 0.0
        %1188 = vmatmul.mubr.f32.gmra.mxu0 %v804
        %v1189 = vpop.f32.mrf.mxu0
        %v1190 = vadd.f32 %v831, %v1189
        %v1191 = vpop.f32.mrf.mxu0
        %1192 = vmatprep.mubr.f32.mxu0 0.0
        %1193 = vmatmul.mubr.f32.gmra.mxu0 %v805
        %v1194 = vpop.f32.mrf.mxu0
        %v1195 = vadd.f32 %v831, %v1194
        %v1196 = vpop.f32.mrf.mxu0
        %1197 = vmatprep.mubr.f32.mxu0 0.0
        %1198 = vmatmul.mubr.f32.gmra.mxu0 %v806
        %v1199 = vpop.f32.mrf.mxu0
        %v1200 = vadd.f32 %v831, %v1199
        %v1201 = vpop.f32.mrf.mxu0
        %1202 = vmatprep.mubr.f32.mxu0 0.0
        %1203 = vmatmul.mubr.f32.gmra.mxu0 %v807
        %v1204 = vpop.f32.mrf.mxu0
        %v1205 = vadd.f32 %v831, %v1204
        %v1206 = vpop.f32.mrf.mxu0
        %1207 = vmatprep.mubr.f32.mxu0 0.0
        %1208 = vmatmul.mubr.f32.gmra.mxu0 %v808
        %v1209 = vpop.f32.mrf.mxu0
        %v1210 = vadd.f32 %v831, %v1209
        %v1211 = vpop.f32.mrf.mxu0
        %1212 = vmatprep.mubr.f32.mxu0 0.0
        %1213 = vmatmul.mubr.f32.gmra.mxu0 %v809
        %v1214 = vpop.f32.mrf.mxu0
        %v1215 = vadd.f32 %v831, %v1214
        %v1216 = vpop.f32.mrf.mxu0
        %1217 = vdwg.mxu0
        %v1218 = vadd.f32 %v900, %v428
        %v1219 = vadd.f32 %v905, %v433
        %v1220 = vadd.f32 %v910, %v438
        %v1221 = vadd.f32 %v915, %v443
        %v1222 = vadd.f32 %v920, %v448
        %v1223 = vadd.f32 %v925, %v453
        %v1224 = vadd.f32 %v930, %v458
        %v1225 = vadd.f32 %v935, %v463
        %v1226 = vadd.f32 %v940, %v468
        %v1227 = vadd.f32 %v945, %v473
        %v1228 = vadd.f32 %v950, %v478
        %v1229 = vadd.f32 %v955, %v483
        %v1230 = vadd.f32 %v960, %v488
        %v1231 = vadd.f32 %v965, %v493
        %v1232 = vadd.f32 %v970, %v498
        %v1233 = vadd.f32 %v975, %v503
        %v1234 = vadd.f32 %v980, %v508
        %v1235 = vadd.f32 %v985, %v513
        %v1236 = vadd.f32 %v990, %v518
        %v1237 = vadd.f32 %v995, %v523
        %v1238 = vadd.f32 %v1000, %v528
        %v1239 = vadd.f32 %v1005, %v533
        %v1240 = vadd.f32 %v1010, %v538
        %v1241 = vadd.f32 %v1015, %v543
        %v1242 = vadd.f32 %v1020, %v548
        %v1243 = vadd.f32 %v1025, %v553
        %v1244 = vadd.f32 %v1030, %v558
        %v1245 = vadd.f32 %v1035, %v563
        %v1246 = vadd.f32 %v1040, %v568
        %v1247 = vadd.f32 %v1045, %v573
        %v1248 = vadd.f32 %v1050, %v578
        %v1249 = vadd.f32 %v1055, %v583
        %v1250 = vadd.f32 %v1060, %v588
        %v1251 = vadd.f32 %v1065, %v593
        %v1252 = vadd.f32 %v1070, %v598
        %v1253 = vadd.f32 %v1075, %v603
        %v1254 = vadd.f32 %v1080, %v608
        %v1255 = vadd.f32 %v1085, %v613
        %v1256 = vadd.f32 %v1090, %v618
        %v1257 = vadd.f32 %v1095, %v623
        %v1258 = vadd.f32 %v1100, %v628
        %v1259 = vadd.f32 %v1105, %v633
        %v1260 = vadd.f32 %v1110, %v638
        %v1261 = vadd.f32 %v1115, %v643
        %v1262 = vadd.f32 %v1120, %v648
        %v1263 = vadd.f32 %v1125, %v653
        %v1264 = vadd.f32 %v1130, %v658
        %v1265 = vadd.f32 %v1135, %v663
        %v1266 = vadd.f32 %v1140, %v668
        %v1267 = vadd.f32 %v1145, %v673
        %v1268 = vadd.f32 %v1150, %v678
        %v1269 = vadd.f32 %v1155, %v683
        %v1270 = vadd.f32 %v1160, %v688
        %v1271 = vadd.f32 %v1165, %v693
        %v1272 = vadd.f32 %v1170, %v698
        %v1273 = vadd.f32 %v1175, %v703
        %v1274 = vadd.f32 %v1180, %v708
        %v1275 = vadd.f32 %v1185, %v713
        %v1276 = vadd.f32 %v1190, %v718
        %v1277 = vadd.f32 %v1195, %v723
        %v1278 = vadd.f32 %v1200, %v728
        %v1279 = vadd.f32 %v1205, %v733
        %v1280 = vadd.f32 %v1210, %v738
        %v1281 = vadd.f32 %v1215, %v743
        %1282 = vst [vmem:[%s271] sm:$0xff] %v1218
        %1283 = vst [vmem:[%s271 + $0x8] sm:$0xff] %v1219
        %1284 = vst [vmem:[%s271 + $0x10] sm:$0xff] %v1220
        %1285 = vst [vmem:[%s271 + $0x18] sm:$0xff] %v1221
        %1286 = vst [vmem:[%s271 + $0x20] sm:$0xff] %v1222
        %1287 = vst [vmem:[%s271 + $0x28] sm:$0xff] %v1223
        %1288 = vst [vmem:[%s271 + $0x30] sm:$0xff] %v1224
        %1289 = vst [vmem:[%s271 + $0x38] sm:$0xff] %v1225
        %1290 = vst [vmem:[%s271 + $0x40] sm:$0xff] %v1226
        %1291 = vst [vmem:[%s271 + $0x48] sm:$0xff] %v1227
        %1292 = vst [vmem:[%s271 + $0x50] sm:$0xff] %v1228
        %1293 = vst [vmem:[%s271 + $0x58] sm:$0xff] %v1229
        %1294 = vst [vmem:[%s271 + $0x60] sm:$0xff] %v1230
        %1295 = vst [vmem:[%s271 + $0x68] sm:$0xff] %v1231
        %1296 = vst [vmem:[%s271 + $0x70] sm:$0xff] %v1232
        %1297 = vst [vmem:[%s271 + $0x78] sm:$0xff] %v1233
        %1298 = vst [vmem:[%s271 + $0x80] sm:$0xff] %v1234
        %1299 = vst [vmem:[%s271 + $0x88] sm:$0xff] %v1235
        %1300 = vst [vmem:[%s271 + $0x90] sm:$0xff] %v1236
        %1301 = vst [vmem:[%s271 + $0x98] sm:$0xff] %v1237
        %1302 = vst [vmem:[%s271 + $0xa0] sm:$0xff] %v1238
        %1303 = vst [vmem:[%s271 + $0xa8] sm:$0xff] %v1239
        %1304 = vst [vmem:[%s271 + $0xb0] sm:$0xff] %v1240
        %1305 = vst [vmem:[%s271 + $0xb8] sm:$0xff] %v1241
        %1306 = vst [vmem:[%s271 + $0xc0] sm:$0xff] %v1242
        %1307 = vst [vmem:[%s271 + $0xc8] sm:$0xff] %v1243
        %1308 = vst [vmem:[%s271 + $0xd0] sm:$0xff] %v1244
        %1309 = vst [vmem:[%s271 + $0xd8] sm:$0xff] %v1245
        %1310 = vst [vmem:[%s271 + $0xe0] sm:$0xff] %v1246
        %1311 = vst [vmem:[%s271 + $0xe8] sm:$0xff] %v1247
        %1312 = vst [vmem:[%s271 + $0xf0] sm:$0xff] %v1248
        %1313 = vst [vmem:[%s271 + $0xf8] sm:$0xff] %v1249
        %1314 = vst [vmem:[%s271 + $0x100] sm:$0xff] %v1250
        %1315 = vst [vmem:[%s271 + $0x108] sm:$0xff] %v1251
        %1316 = vst [vmem:[%s271 + $0x110] sm:$0xff] %v1252
        %1317 = vst [vmem:[%s271 + $0x118] sm:$0xff] %v1253
        %1318 = vst [vmem:[%s271 + $0x120] sm:$0xff] %v1254
        %1319 = vst [vmem:[%s271 + $0x128] sm:$0xff] %v1255
        %1320 = vst [vmem:[%s271 + $0x130] sm:$0xff] %v1256
        %1321 = vst [vmem:[%s271 + $0x138] sm:$0xff] %v1257
        %1322 = vst [vmem:[%s271 + $0x140] sm:$0xff] %v1258
        %1323 = vst [vmem:[%s271 + $0x148] sm:$0xff] %v1259
        %1324 = vst [vmem:[%s271 + $0x150] sm:$0xff] %v1260
        %1325 = vst [vmem:[%s271 + $0x158] sm:$0xff] %v1261
        %1326 = vst [vmem:[%s271 + $0x160] sm:$0xff] %v1262
        %1327 = vst [vmem:[%s271 + $0x168] sm:$0xff] %v1263
        %1328 = vst [vmem:[%s271 + $0x170] sm:$0xff] %v1264
        %1329 = vst [vmem:[%s271 + $0x178] sm:$0xff] %v1265
        %1330 = vst [vmem:[%s271 + $0x180] sm:$0xff] %v1266
        %1331 = vst [vmem:[%s271 + $0x188] sm:$0xff] %v1267
        %1332 = vst [vmem:[%s271 + $0x190] sm:$0xff] %v1268
        %1333 = vst [vmem:[%s271 + $0x198] sm:$0xff] %v1269
        %1334 = vst [vmem:[%s271 + $0x1a0] sm:$0xff] %v1270
        %1335 = vst [vmem:[%s271 + $0x1a8] sm:$0xff] %v1271
        %1336 = vst [vmem:[%s271 + $0x1b0] sm:$0xff] %v1272
        %1337 = vst [vmem:[%s271 + $0x1b8] sm:$0xff] %v1273
        %1338 = vst [vmem:[%s271 + $0x1c0] sm:$0xff] %v1274
        %1339 = vst [vmem:[%s271 + $0x1c8] sm:$0xff] %v1275
        %1340 = vst [vmem:[%s271 + $0x1d0] sm:$0xff] %v1276
        %1341 = vst [vmem:[%s271 + $0x1d8] sm:$0xff] %v1277
        %1342 = vst [vmem:[%s271 + $0x1e0] sm:$0xff] %v1278
        %1343 = vst [vmem:[%s271 + $0x1e8] sm:$0xff] %v1279
        %1344 = vst [vmem:[%s271 + $0x1f0] sm:$0xff] %v1280
        %1345 = vst [vmem:[%s271 + $0x1f8] sm:$0xff] %v1281
        %s1346 = sand.u32 %s141, 1
        %s1347 = scalar_lea.sflag [#allocation4], %s1346
        %s1348 = sand.u32 %s141, 1
        %s1349 = smul.addr %s1348, 512
        %s1350 = scalar_lea.vmem [#allocation8], %s1349
        // Predicated region
        $region53: #{tpu_custom_call.1} parent=39 // pred_check
          %p1351 = pneg %p151
        $region54: #{tpu_custom_call.1} parent=39 // pred_check_branch
          %1353 = sbr.rel (%p1351) target = $region56
        $region55: #{tpu_custom_call.1} parent=39 // pred_region
          %s1354 = smul.u32 64, %s23
          %s1356 = ssub.s32 8192, 8192
          %1357 = vsyncadd %s1347, %s1356
          %s1358 = smul.addr %s1354, 128
          %s1359 = scalar_lea.hbm %s5, %s1358
          %s1360 = sshll.u32 %s1350, 4
          %s1361 = int_to_ptr.vmem [resolvable:$true] %s1360
          %1366 = dma.vmem_to_hbm [thread:$0]  %s1361, 8192, %s1359, %s1347, 128, 128, 8
        $region56: #{tpu_custom_call.1} parent=39 // pred_fallthru
          _
      $region40: #{tpu_custom_call.1} parent=5 // pred_fallthru
        _
      %p1367 = scmp.le.s32.totalorder 2, %s18
      // Predicated region
      $region57: #{tpu_custom_call.1} parent=5 // pred_check
        %p1368 = pneg %p1367
      $region58: #{tpu_custom_call.1} parent=5 // pred_check_branch
        %1370 = sbr.rel (%p1368) target = $region60
      $region59: #{tpu_custom_call.1} parent=5 // pred_region
        %s1371 = ssub.s32 %s18, 2
        // Predicated region
        $region61: #{tpu_custom_call.1} parent=59 // pred_check
          %p1372 = pneg %p157
        $region62: #{tpu_custom_call.1} parent=59 // pred_check_branch
          %1374 = sbr.rel (%p1372) target = $region64
        $region63: #{tpu_custom_call.1} parent=59 // pred_region
          %s1375 = sand.u32 %s142, 1
          %s1376 = scalar_lea.sflag [#allocation4], %s1375
          %s1377 = sand.u32 %s142, 1
          %s1378 = smul.addr %s1377, 512
          %s1379 = scalar_lea.vmem [#allocation8], %s1378
          %1380 = dma.done %s1376, 8192
        $region64: #{tpu_custom_call.1} parent=59 // pred_fallthru
          _
      $region60: #{tpu_custom_call.1} parent=5 // pred_fallthru
        _
    $region6: #{tpu_custom_call.1} parent=1 // loop_footer
      %s22 = sadd.s32 1, %s18
    $region7: #{tpu_custom_call.1} parent=1 // loop_footer_branch
      %17 = sbr.rel target = $region3
    $region8: #{tpu_custom_call.1} parent=1 // loop_exit
      _
    %1381 = vsyncpa [#allocation3], 1
    %s1382 = scalar_lea.sflag [#allocation3], 1
    %1383 = vsyncpa %s1382, 1
    %1384 = vsyncpa [#allocation6], 1
    %1385 = vsyncpa [#allocation4], 1
    %s1386 = scalar_lea.sflag [#allocation4], 1
    %1387 = vsyncpa %s1386, 1

</llo_original>
